<compile_context>
chip_gen: v7x
topology: tpu7x:2x2x1
jax: 0.10.0
libtpu: 0.0.40
codegen_flags: <defaults>
</compile_context>

<pallas_src>
import math

import jax
import jax.numpy as jnp
from jax import lax
from jax.experimental import pallas as pl
from jax.experimental.pallas import tpu as pltpu

# ---------------- model hyper-parameters (small, deterministic) ----------------
B = 2            # batch
S = 8            # sequence length
D = 32           # d_model
H = 4            # attention heads
HD = D // H      # head dim
F = 64           # FFN hidden dim
C = 4            # num classes
EPS = 1e-5
NEG = -1e30      # large finite negative (not -inf: avoids inf-inf NaN)

# Block-diagonal additive attention mask, built once at import time.
_row_batch = jnp.arange(B * S) // S
_ATTN_MASK = jnp.where(
    _row_batch[:, None] == _row_batch[None, :], 0.0, NEG
).astype(jnp.float32)                                       # (B*S, B*S)


def _layernorm(y, gamma, beta):
    # E[y^2] - mu^2 form: the two row reductions are independent -> dual-issue XLU.
    mu = jnp.mean(y, axis=-1, keepdims=True)
    ms = jnp.mean(y * y, axis=-1, keepdims=True)
    var = ms - mu * mu
    return (y - mu) * lax.rsqrt(var + EPS) * gamma + beta


def transformer_classifier_kernel(
    x_ref, mask_ref,                         # (B*S, D) activations, (B*S, B*S) mask
    wqkv_ref, bqkv_ref,                      # fused QKV projection (D, 3D), (1, 3D)
    wo_ref, bo_ref,                          # attention output projection
    g1_ref, be1_ref,                         # layernorm 1
    w1_ref, b1_ref, w2_ref, b2_ref,          # FFN
    g2_ref, be2_ref,                         # layernorm 2
    wc_ref, bc_ref,                          # classifier
    o_ref,                                   # (B, C) logits
):
    xf = x_ref[...]                          # (B*S, D) — whole batch, one step
    mask = mask_ref[...]                     # (B*S, B*S) block-diag additive mask

    # --- fused QKV projection: one 96-lane MXU matmul instead of three ---
    # (1/sqrt(HD) scale already folded into the Wq slice by prepare_params.)
    qkv = jnp.dot(xf, wqkv_ref[...], preferred_element_type=jnp.float32) + bqkv_ref[...]
    q = qkv[:, 0 * D:1 * D]
    k = qkv[:, 1 * D:2 * D]
    v = qkv[:, 2 * D:3 * D]

    # --- attention: all B*S rows at once per head (batch merged via mask) ---
    heads = []
    for h in range(H):                       # static unroll, H = 4
        cols = slice(h * HD, (h + 1) * HD)
        qh = q[:, cols]                      # (B*S, HD)
        kh = k[:, cols]
        vh = v[:, cols]
        # q @ k^T without an explicit transpose (contract last axes of both)
        s = lax.dot_general(
            qh, kh,
            dimension_numbers=(((1,), (1,)), ((), ())),
            preferred_element_type=jnp.float32)             # (B*S, B*S)
        s = s + mask                                          # kill cross-batch
        s = s - jnp.max(s, axis=-1, keepdims=True)
        p = jnp.exp(s)
        denom = jnp.sum(p, axis=-1, keepdims=True)
        r = pl.reciprocal(denom, approx=True)                 # EUP vrcp slot
        r = r * (2.0 - denom * r)                             # one Newton step
        p = p * r
        heads.append(jnp.dot(p, vh, preferred_element_type=jnp.float32))  # (B*S, HD)

    # --- single output projection on the concatenated head context ---
    ctx = jnp.concatenate(heads, axis=-1)                     # (B*S, D)
    attn = jnp.dot(ctx, wo_ref[...], preferred_element_type=jnp.float32) + bo_ref[...]

    y = _layernorm(xf + attn, g1_ref[...], be1_ref[...])      # (B*S, D)

    # --- feed-forward network (flattened rows, position-independent) ---
    h1 = jnp.maximum(
        jnp.dot(y, w1_ref[...], preferred_element_type=jnp.float32) + b1_ref[...], 0.0)
    ff = jnp.dot(h1, w2_ref[...], preferred_element_type=jnp.float32) + b2_ref[...]
    z = _layernorm(y + ff, g2_ref[...], be2_ref[...])         # (B*S, D)

    # --- classifier first, then per-batch mean pooling ---
    # mean(z) @ Wc == mean(z @ Wc): reductions shrink from 32 lanes to C=4.
    zc = jnp.dot(z, wc_ref[...], preferred_element_type=jnp.float32)      # (B*S, C)
    pooled = jnp.concatenate(
        [jnp.mean(zc[b * S:(b + 1) * S, :], axis=0, keepdims=True) for b in range(B)],
        axis=0)                                                           # (B, C)
    o_ref[...] = pooled + bc_ref[...]


def prepare_params(params):
    """One-time weight fusion — hoisted out of the per-call path."""
    (wq, bq, wk, bk, wv, bv, wo, bo,
     g1, be1, w1, b1, w2, b2, g2, be2, wc, bc) = params
    scale = 1.0 / math.sqrt(HD)
    wqkv = jnp.concatenate([wq * scale, wk, wv], axis=1)      # (D, 3D)
    bqkv = jnp.concatenate([bq * scale, bk, bv], axis=1)      # (1, 3D)
    return (wqkv, bqkv, wo, bo, g1, be1, w1, b1, w2, b2, g2, be2, wc, bc)


def transformer_classifier(x, fused_params):
    """x: [B, S, D] float32 -> logits [B, C] float32. Params from prepare_params()."""
    xf = x.reshape(B * S, D)    # free relayout: row-major contiguous

    vmem = pl.BlockSpec(memory_space=pltpu.MemorySpace.VMEM)
    return pl.pallas_call(
        transformer_classifier_kernel,
        out_shape=jax.ShapeDtypeStruct((B, C), jnp.float32),
        in_specs=[vmem] * (2 + len(fused_params)),
        out_specs=vmem,
    )(xf, _ATTN_MASK, *fused_params)


# ---------------- pure-JAX reference (for correctness check) ----------------
def _layernorm_ref(y, gamma, beta):
    mu = jnp.mean(y, axis=-1, keepdims=True)
    var = jnp.mean((y - mu) ** 2, axis=-1, keepdims=True)
    return (y - mu) * lax.rsqrt(var + EPS) * gamma + beta


def reference(x, params):
    (wq, bq, wk, bk, wv, bv, wo, bo,
     g1, be1, w1, b1, w2, b2, g2, be2, wc, bc) = params
    outs = []
    for b in range(B):
        xb = x[b]
        q = xb @ wq + bq
        k = xb @ wk + bk
        v = xb @ wv + bv
        heads = []
        for h in range(H):
            sl = slice(h * HD, (h + 1) * HD)
            s = (q[:, sl] @ k[:, sl].T) / math.sqrt(HD)
            p = jax.nn.softmax(s, axis=-1)
            heads.append(p @ v[:, sl])
        attn = jnp.concatenate(heads, axis=-1) @ wo + bo
        y = _layernorm_ref(xb + attn, g1, be1)
        ff = jnp.maximum(y @ w1 + b1, 0.0) @ w2 + b2
        z = _layernorm_ref(y + ff, g2, be2)
        pooled = jnp.mean(z, axis=0, keepdims=True)
        outs.append(pooled @ wc + bc)
    return jnp.concatenate(outs, axis=0)


def init_params(key):
    ks = jax.random.split(key, 12)
    s = 0.1
    wq = jax.random.normal(ks[0], (D, D), jnp.float32) * s
    wk = jax.random.normal(ks[1], (D, D), jnp.float32) * s
    wv = jax.random.normal(ks[2], (D, D), jnp.float32) * s
    wo = jax.random.normal(ks[3], (D, D), jnp.float32) * s
    bq = jax.random.normal(ks[4], (1, D), jnp.float32) * s
    bk = jax.random.normal(ks[5], (1, D), jnp.float32) * s
    bv = jax.random.normal(ks[6], (1, D), jnp.float32) * s
    bo = jax.random.normal(ks[7], (1, D), jnp.float32) * s
    g1 = jnp.ones((1, D), jnp.float32)
    be1 = jnp.zeros((1, D), jnp.float32)
    w1 = jax.random.normal(ks[8], (D, F), jnp.float32) * s
    b1 = jnp.zeros((1, F), jnp.float32)
    w2 = jax.random.normal(ks[9], (F, D), jnp.float32) * s
    b2 = jnp.zeros((1, D), jnp.float32)
    g2 = jnp.ones((1, D), jnp.float32)
    be2 = jnp.zeros((1, D), jnp.float32)
    wc = jax.random.normal(ks[10], (D, C), jnp.float32) * s
    bc = jax.random.normal(ks[11], (1, C), jnp.float32) * s
    return (wq, bq, wk, bk, wv, bv, wo, bo,
            g1, be1, w1, b1, w2, b2, g2, be2, wc, bc)


if __name__ == "__main__":
    key = jax.random.PRNGKey(0)
    kx, kp = jax.random.split(key)
    x = jax.random.normal(kx, (B, S, D), jnp.float32)
    params = init_params(kp)

    # Weight fusion done exactly once, outside the per-call path.
    fused = prepare_params(params)
    fused = tuple(jax.block_until_ready(p) for p in fused)

    logits = transformer_classifier(x, fused)
    jax.block_until_ready(logits)

    ref = reference(x, params)
    assert logits.shape == (B, C), logits.shape
    assert jnp.allclose(logits, ref, rtol=1e-4, atol=1e-4), (logits, ref)
    print("KERNEL_OK")
</pallas_src>

<mosaic_0001>
module attributes {stable_mosaic.version = 11 : i64} {
  func.func @transformer_classifier_kernel(%arg0: memref<16x32xf32, #tpu.memory_space<vmem>>, %arg1: memref<16x16xf32, #tpu.memory_space<vmem>>, %arg2: memref<32x96xf32, #tpu.memory_space<vmem>>, %arg3: memref<1x96xf32, #tpu.memory_space<vmem>>, %arg4: memref<32x32xf32, #tpu.memory_space<vmem>>, %arg5: memref<1x32xf32, #tpu.memory_space<vmem>>, %arg6: memref<1x32xf32, #tpu.memory_space<vmem>>, %arg7: memref<1x32xf32, #tpu.memory_space<vmem>>, %arg8: memref<32x64xf32, #tpu.memory_space<vmem>>, %arg9: memref<1x64xf32, #tpu.memory_space<vmem>>, %arg10: memref<64x32xf32, #tpu.memory_space<vmem>>, %arg11: memref<1x32xf32, #tpu.memory_space<vmem>>, %arg12: memref<1x32xf32, #tpu.memory_space<vmem>>, %arg13: memref<1x32xf32, #tpu.memory_space<vmem>>, %arg14: memref<32x4xf32, #tpu.memory_space<vmem>>, %arg15: memref<1x4xf32, #tpu.memory_space<vmem>>, %arg16: memref<2x4xf32, #tpu.memory_space<vmem>>) attributes {dimension_semantics = [], scalar_prefetch = 0 : i64, scratch_operands = 0 : i64, tpu.core_type = #tpu.core_type<tc>} {
    %c0 = arith.constant 0 : index
    %c0_0 = arith.constant 0 : index
    %0 = vector.load %arg0[%c0, %c0_0] : memref<16x32xf32, #tpu.memory_space<vmem>>, vector<16x32xf32>
    %c0_1 = arith.constant 0 : index
    %c0_2 = arith.constant 0 : index
    %1 = vector.load %arg1[%c0_1, %c0_2] : memref<16x16xf32, #tpu.memory_space<vmem>>, vector<16x16xf32>
    %c0_3 = arith.constant 0 : index
    %c0_4 = arith.constant 0 : index
    %2 = vector.load %arg2[%c0_3, %c0_4] : memref<32x96xf32, #tpu.memory_space<vmem>>, vector<32x96xf32>
    %cst = arith.constant dense<0.000000e+00> : vector<16x96xf32>
    %3 = tpu.matmul %0, %2, %cst {dimension_numbers = #tpu.dot_dimension_numbers<[1], [0], [0], [1], [0, 0, 1, 1], [], []>} : vector<16x32xf32>, vector<32x96xf32>, vector<16x96xf32> -> vector<16x96xf32>
    %c0_5 = arith.constant 0 : index
    %c0_6 = arith.constant 0 : index
    %4 = vector.load %arg3[%c0_5, %c0_6] : memref<1x96xf32, #tpu.memory_space<vmem>>, vector<1x96xf32>
    %5 = vector.broadcast %4 : vector<1x96xf32> to vector<16x96xf32>
    %6 = arith.addf %3, %5 : vector<16x96xf32>
    %7 = vector.extract_strided_slice %6 {offsets = [0, 0], sizes = [16, 32], strides = [1, 1]} : vector<16x96xf32> to vector<16x32xf32>
    %8 = vector.extract_strided_slice %6 {offsets = [0, 32], sizes = [16, 32], strides = [1, 1]} : vector<16x96xf32> to vector<16x32xf32>
    %9 = vector.extract_strided_slice %6 {offsets = [0, 64], sizes = [16, 32], strides = [1, 1]} : vector<16x96xf32> to vector<16x32xf32>
    %10 = vector.extract_strided_slice %7 {offsets = [0, 0], sizes = [16, 8], strides = [1, 1]} : vector<16x32xf32> to vector<16x8xf32>
    %11 = vector.extract_strided_slice %8 {offsets = [0, 0], sizes = [16, 8], strides = [1, 1]} : vector<16x32xf32> to vector<16x8xf32>
    %12 = vector.extract_strided_slice %9 {offsets = [0, 0], sizes = [16, 8], strides = [1, 1]} : vector<16x32xf32> to vector<16x8xf32>
    %cst_7 = arith.constant dense<0.000000e+00> : vector<16x16xf32>
    %13 = tpu.matmul %10, %11, %cst_7 {dimension_numbers = #tpu.dot_dimension_numbers<[1], [1], [0], [0], [0, 0, 1, 0], [], []>} : vector<16x8xf32>, vector<16x8xf32>, vector<16x16xf32> -> vector<16x16xf32>
    %14 = arith.addf %13, %1 : vector<16x16xf32>
    %cst_8 = arith.constant dense<0xFF800000> : vector<16xf32>
    %15 = vector.multi_reduction <maximumf>, %14, %cst_8 [1] : vector<16x16xf32> to vector<16xf32>
    %16 = vector.shape_cast %15 : vector<16xf32> to vector<16x1xf32>
    %17 = vector.broadcast %16 : vector<16x1xf32> to vector<16x16xf32>
    %18 = arith.subf %14, %17 : vector<16x16xf32>
    %19 = math.exp %18 : vector<16x16xf32>
    %cst_9 = arith.constant dense<0.000000e+00> : vector<16xf32>
    %20 = vector.multi_reduction <add>, %19, %cst_9 [1] : vector<16x16xf32> to vector<16xf32>
    %21 = vector.shape_cast %20 : vector<16xf32> to vector<16x1xf32>
    %22 = tpu.reciprocal %21 {approx = true} : vector<16x1xf32> -> vector<16x1xf32>
    %23 = arith.mulf %21, %22 : vector<16x1xf32>
    %cst_10 = arith.constant 2.000000e+00 : f32
    %24 = vector.broadcast %cst_10 : f32 to vector<16x1xf32>
    %25 = arith.subf %24, %23 : vector<16x1xf32>
    %26 = arith.mulf %22, %25 : vector<16x1xf32>
    %27 = vector.broadcast %26 : vector<16x1xf32> to vector<16x16xf32>
    %28 = arith.mulf %19, %27 : vector<16x16xf32>
    %cst_11 = arith.constant dense<0.000000e+00> : vector<16x8xf32>
    %29 = tpu.matmul %28, %12, %cst_11 {dimension_numbers = #tpu.dot_dimension_numbers<[1], [0], [0], [1], [0, 0, 1, 1], [], []>} : vector<16x16xf32>, vector<16x8xf32>, vector<16x8xf32> -> vector<16x8xf32>
    %30 = vector.extract_strided_slice %7 {offsets = [0, 8], sizes = [16, 8], strides = [1, 1]} : vector<16x32xf32> to vector<16x8xf32>
    %31 = vector.extract_strided_slice %8 {offsets = [0, 8], sizes = [16, 8], strides = [1, 1]} : vector<16x32xf32> to vector<16x8xf32>
    %32 = vector.extract_strided_slice %9 {offsets = [0, 8], sizes = [16, 8], strides = [1, 1]} : vector<16x32xf32> to vector<16x8xf32>
    %cst_12 = arith.constant dense<0.000000e+00> : vector<16x16xf32>
    %33 = tpu.matmul %30, %31, %cst_12 {dimension_numbers = #tpu.dot_dimension_numbers<[1], [1], [0], [0], [0, 0, 1, 0], [], []>} : vector<16x8xf32>, vector<16x8xf32>, vector<16x16xf32> -> vector<16x16xf32>
    %34 = arith.addf %33, %1 : vector<16x16xf32>
    %cst_13 = arith.constant dense<0xFF800000> : vector<16xf32>
    %35 = vector.multi_reduction <maximumf>, %34, %cst_13 [1] : vector<16x16xf32> to vector<16xf32>
    %36 = vector.shape_cast %35 : vector<16xf32> to vector<16x1xf32>
    %37 = vector.broadcast %36 : vector<16x1xf32> to vector<16x16xf32>
    %38 = arith.subf %34, %37 : vector<16x16xf32>
    %39 = math.exp %38 : vector<16x16xf32>
    %cst_14 = arith.constant dense<0.000000e+00> : vector<16xf32>
    %40 = vector.multi_reduction <add>, %39, %cst_14 [1] : vector<16x16xf32> to vector<16xf32>
    %41 = vector.shape_cast %40 : vector<16xf32> to vector<16x1xf32>
    %42 = tpu.reciprocal %41 {approx = true} : vector<16x1xf32> -> vector<16x1xf32>
    %43 = arith.mulf %41, %42 : vector<16x1xf32>
    %cst_15 = arith.constant 2.000000e+00 : f32
    %44 = vector.broadcast %cst_15 : f32 to vector<16x1xf32>
    %45 = arith.subf %44, %43 : vector<16x1xf32>
    %46 = arith.mulf %42, %45 : vector<16x1xf32>
    %47 = vector.broadcast %46 : vector<16x1xf32> to vector<16x16xf32>
    %48 = arith.mulf %39, %47 : vector<16x16xf32>
    %cst_16 = arith.constant dense<0.000000e+00> : vector<16x8xf32>
    %49 = tpu.matmul %48, %32, %cst_16 {dimension_numbers = #tpu.dot_dimension_numbers<[1], [0], [0], [1], [0, 0, 1, 1], [], []>} : vector<16x16xf32>, vector<16x8xf32>, vector<16x8xf32> -> vector<16x8xf32>
    %50 = vector.extract_strided_slice %7 {offsets = [0, 16], sizes = [16, 8], strides = [1, 1]} : vector<16x32xf32> to vector<16x8xf32>
    %51 = vector.extract_strided_slice %8 {offsets = [0, 16], sizes = [16, 8], strides = [1, 1]} : vector<16x32xf32> to vector<16x8xf32>
    %52 = vector.extract_strided_slice %9 {offsets = [0, 16], sizes = [16, 8], strides = [1, 1]} : vector<16x32xf32> to vector<16x8xf32>
    %cst_17 = arith.constant dense<0.000000e+00> : vector<16x16xf32>
    %53 = tpu.matmul %50, %51, %cst_17 {dimension_numbers = #tpu.dot_dimension_numbers<[1], [1], [0], [0], [0, 0, 1, 0], [], []>} : vector<16x8xf32>, vector<16x8xf32>, vector<16x16xf32> -> vector<16x16xf32>
    %54 = arith.addf %53, %1 : vector<16x16xf32>
    %cst_18 = arith.constant dense<0xFF800000> : vector<16xf32>
    %55 = vector.multi_reduction <maximumf>, %54, %cst_18 [1] : vector<16x16xf32> to vector<16xf32>
    %56 = vector.shape_cast %55 : vector<16xf32> to vector<16x1xf32>
    %57 = vector.broadcast %56 : vector<16x1xf32> to vector<16x16xf32>
    %58 = arith.subf %54, %57 : vector<16x16xf32>
    %59 = math.exp %58 : vector<16x16xf32>
    %cst_19 = arith.constant dense<0.000000e+00> : vector<16xf32>
    %60 = vector.multi_reduction <add>, %59, %cst_19 [1] : vector<16x16xf32> to vector<16xf32>
    %61 = vector.shape_cast %60 : vector<16xf32> to vector<16x1xf32>
    %62 = tpu.reciprocal %61 {approx = true} : vector<16x1xf32> -> vector<16x1xf32>
    %63 = arith.mulf %61, %62 : vector<16x1xf32>
    %cst_20 = arith.constant 2.000000e+00 : f32
    %64 = vector.broadcast %cst_20 : f32 to vector<16x1xf32>
    %65 = arith.subf %64, %63 : vector<16x1xf32>
    %66 = arith.mulf %62, %65 : vector<16x1xf32>
    %67 = vector.broadcast %66 : vector<16x1xf32> to vector<16x16xf32>
    %68 = arith.mulf %59, %67 : vector<16x16xf32>
    %cst_21 = arith.constant dense<0.000000e+00> : vector<16x8xf32>
    %69 = tpu.matmul %68, %52, %cst_21 {dimension_numbers = #tpu.dot_dimension_numbers<[1], [0], [0], [1], [0, 0, 1, 1], [], []>} : vector<16x16xf32>, vector<16x8xf32>, vector<16x8xf32> -> vector<16x8xf32>
    %70 = vector.extract_strided_slice %7 {offsets = [0, 24], sizes = [16, 8], strides = [1, 1]} : vector<16x32xf32> to vector<16x8xf32>
    %71 = vector.extract_strided_slice %8 {offsets = [0, 24], sizes = [16, 8], strides = [1, 1]} : vector<16x32xf32> to vector<16x8xf32>
    %72 = vector.extract_strided_slice %9 {offsets = [0, 24], sizes = [16, 8], strides = [1, 1]} : vector<16x32xf32> to vector<16x8xf32>
    %cst_22 = arith.constant dense<0.000000e+00> : vector<16x16xf32>
    %73 = tpu.matmul %70, %71, %cst_22 {dimension_numbers = #tpu.dot_dimension_numbers<[1], [1], [0], [0], [0, 0, 1, 0], [], []>} : vector<16x8xf32>, vector<16x8xf32>, vector<16x16xf32> -> vector<16x16xf32>
    %74 = arith.addf %73, %1 : vector<16x16xf32>
    %cst_23 = arith.constant dense<0xFF800000> : vector<16xf32>
    %75 = vector.multi_reduction <maximumf>, %74, %cst_23 [1] : vector<16x16xf32> to vector<16xf32>
    %76 = vector.shape_cast %75 : vector<16xf32> to vector<16x1xf32>
    %77 = vector.broadcast %76 : vector<16x1xf32> to vector<16x16xf32>
    %78 = arith.subf %74, %77 : vector<16x16xf32>
    %79 = math.exp %78 : vector<16x16xf32>
    %cst_24 = arith.constant dense<0.000000e+00> : vector<16xf32>
    %80 = vector.multi_reduction <add>, %79, %cst_24 [1] : vector<16x16xf32> to vector<16xf32>
    %81 = vector.shape_cast %80 : vector<16xf32> to vector<16x1xf32>
    %82 = tpu.reciprocal %81 {approx = true} : vector<16x1xf32> -> vector<16x1xf32>
    %83 = arith.mulf %81, %82 : vector<16x1xf32>
    %cst_25 = arith.constant 2.000000e+00 : f32
    %84 = vector.broadcast %cst_25 : f32 to vector<16x1xf32>
    %85 = arith.subf %84, %83 : vector<16x1xf32>
    %86 = arith.mulf %82, %85 : vector<16x1xf32>
    %87 = vector.broadcast %86 : vector<16x1xf32> to vector<16x16xf32>
    %88 = arith.mulf %79, %87 : vector<16x16xf32>
    %cst_26 = arith.constant dense<0.000000e+00> : vector<16x8xf32>
    %89 = tpu.matmul %88, %72, %cst_26 {dimension_numbers = #tpu.dot_dimension_numbers<[1], [0], [0], [1], [0, 0, 1, 1], [], []>} : vector<16x16xf32>, vector<16x8xf32>, vector<16x8xf32> -> vector<16x8xf32>
    %90 = tpu.concatenate %29, %49, %69, %89 in 1 : vector<16x8xf32>, vector<16x8xf32>, vector<16x8xf32>, vector<16x8xf32> -> vector<16x32xf32>
    %c0_27 = arith.constant 0 : index
    %c0_28 = arith.constant 0 : index
    %91 = vector.load %arg4[%c0_27, %c0_28] : memref<32x32xf32, #tpu.memory_space<vmem>>, vector<32x32xf32>
    %cst_29 = arith.constant dense<0.000000e+00> : vector<16x32xf32>
    %92 = tpu.matmul %90, %91, %cst_29 {dimension_numbers = #tpu.dot_dimension_numbers<[1], [0], [0], [1], [0, 0, 1, 1], [], []>} : vector<16x32xf32>, vector<32x32xf32>, vector<16x32xf32> -> vector<16x32xf32>
    %c0_30 = arith.constant 0 : index
    %c0_31 = arith.constant 0 : index
    %93 = vector.load %arg5[%c0_30, %c0_31] : memref<1x32xf32, #tpu.memory_space<vmem>>, vector<1x32xf32>
    %94 = vector.broadcast %93 : vector<1x32xf32> to vector<16x32xf32>
    %95 = arith.addf %92, %94 : vector<16x32xf32>
    %96 = arith.addf %0, %95 : vector<16x32xf32>
    %c0_32 = arith.constant 0 : index
    %c0_33 = arith.constant 0 : index
    %97 = vector.load %arg6[%c0_32, %c0_33] : memref<1x32xf32, #tpu.memory_space<vmem>>, vector<1x32xf32>
    %c0_34 = arith.constant 0 : index
    %c0_35 = arith.constant 0 : index
    %98 = vector.load %arg7[%c0_34, %c0_35] : memref<1x32xf32, #tpu.memory_space<vmem>>, vector<1x32xf32>
    %cst_36 = arith.constant dense<0.000000e+00> : vector<16xf32>
    %99 = vector.multi_reduction <add>, %96, %cst_36 [1] : vector<16x32xf32> to vector<16xf32>
    %100 = vector.shape_cast %99 : vector<16xf32> to vector<16x1xf32>
    %cst_37 = arith.constant 3.200000e+01 : f32
    %101 = vector.broadcast %cst_37 : f32 to vector<16x1xf32>
    %102 = arith.divf %100, %101 : vector<16x1xf32>
    %103 = arith.mulf %96, %96 : vector<16x32xf32>
    %cst_38 = arith.constant dense<0.000000e+00> : vector<16xf32>
    %104 = vector.multi_reduction <add>, %103, %cst_38 [1] : vector<16x32xf32> to vector<16xf32>
    %105 = vector.shape_cast %104 : vector<16xf32> to vector<16x1xf32>
    %cst_39 = arith.constant 3.200000e+01 : f32
    %106 = vector.broadcast %cst_39 : f32 to vector<16x1xf32>
    %107 = arith.divf %105, %106 : vector<16x1xf32>
    %108 = arith.mulf %102, %102 : vector<16x1xf32>
    %109 = arith.subf %107, %108 : vector<16x1xf32>
    %110 = vector.broadcast %102 : vector<16x1xf32> to vector<16x32xf32>
    %111 = arith.subf %96, %110 : vector<16x32xf32>
    %cst_40 = arith.constant 9.99999974E-6 : f32
    %112 = vector.broadcast %cst_40 : f32 to vector<16x1xf32>
    %113 = arith.addf %109, %112 : vector<16x1xf32>
    %114 = math.rsqrt %113 : vector<16x1xf32>
    %115 = vector.broadcast %114 : vector<16x1xf32> to vector<16x32xf32>
    %116 = arith.mulf %111, %115 : vector<16x32xf32>
    %117 = vector.broadcast %97 : vector<1x32xf32> to vector<16x32xf32>
    %118 = arith.mulf %116, %117 : vector<16x32xf32>
    %119 = vector.broadcast %98 : vector<1x32xf32> to vector<16x32xf32>
    %120 = arith.addf %118, %119 : vector<16x32xf32>
    %c0_41 = arith.constant 0 : index
    %c0_42 = arith.constant 0 : index
    %121 = vector.load %arg8[%c0_41, %c0_42] : memref<32x64xf32, #tpu.memory_space<vmem>>, vector<32x64xf32>
    %cst_43 = arith.constant dense<0.000000e+00> : vector<16x64xf32>
    %122 = tpu.matmul %120, %121, %cst_43 {dimension_numbers = #tpu.dot_dimension_numbers<[1], [0], [0], [1], [0, 0, 1, 1], [], []>} : vector<16x32xf32>, vector<32x64xf32>, vector<16x64xf32> -> vector<16x64xf32>
    %c0_44 = arith.constant 0 : index
    %c0_45 = arith.constant 0 : index
    %123 = vector.load %arg9[%c0_44, %c0_45] : memref<1x64xf32, #tpu.memory_space<vmem>>, vector<1x64xf32>
    %124 = vector.broadcast %123 : vector<1x64xf32> to vector<16x64xf32>
    %125 = arith.addf %122, %124 : vector<16x64xf32>
    %cst_46 = arith.constant 0.000000e+00 : f32
    %126 = vector.broadcast %cst_46 : f32 to vector<16x64xf32>
    %127 = arith.maximumf %125, %126 : vector<16x64xf32>
    %c0_47 = arith.constant 0 : index
    %c0_48 = arith.constant 0 : index
    %128 = vector.load %arg10[%c0_47, %c0_48] : memref<64x32xf32, #tpu.memory_space<vmem>>, vector<64x32xf32>
    %cst_49 = arith.constant dense<0.000000e+00> : vector<16x32xf32>
    %129 = tpu.matmul %127, %128, %cst_49 {dimension_numbers = #tpu.dot_dimension_numbers<[1], [0], [0], [1], [0, 0, 1, 1], [], []>} : vector<16x64xf32>, vector<64x32xf32>, vector<16x32xf32> -> vector<16x32xf32>
    %c0_50 = arith.constant 0 : index
    %c0_51 = arith.constant 0 : index
    %130 = vector.load %arg11[%c0_50, %c0_51] : memref<1x32xf32, #tpu.memory_space<vmem>>, vector<1x32xf32>
    %131 = vector.broadcast %130 : vector<1x32xf32> to vector<16x32xf32>
    %132 = arith.addf %129, %131 : vector<16x32xf32>
    %133 = arith.addf %120, %132 : vector<16x32xf32>
    %c0_52 = arith.constant 0 : index
    %c0_53 = arith.constant 0 : index
    %134 = vector.load %arg12[%c0_52, %c0_53] : memref<1x32xf32, #tpu.memory_space<vmem>>, vector<1x32xf32>
    %c0_54 = arith.constant 0 : index
    %c0_55 = arith.constant 0 : index
    %135 = vector.load %arg13[%c0_54, %c0_55] : memref<1x32xf32, #tpu.memory_space<vmem>>, vector<1x32xf32>
    %cst_56 = arith.constant dense<0.000000e+00> : vector<16xf32>
    %136 = vector.multi_reduction <add>, %133, %cst_56 [1] : vector<16x32xf32> to vector<16xf32>
    %137 = vector.shape_cast %136 : vector<16xf32> to vector<16x1xf32>
    %cst_57 = arith.constant 3.200000e+01 : f32
    %138 = vector.broadcast %cst_57 : f32 to vector<16x1xf32>
    %139 = arith.divf %137, %138 : vector<16x1xf32>
    %140 = arith.mulf %133, %133 : vector<16x32xf32>
    %cst_58 = arith.constant dense<0.000000e+00> : vector<16xf32>
    %141 = vector.multi_reduction <add>, %140, %cst_58 [1] : vector<16x32xf32> to vector<16xf32>
    %142 = vector.shape_cast %141 : vector<16xf32> to vector<16x1xf32>
    %cst_59 = arith.constant 3.200000e+01 : f32
    %143 = vector.broadcast %cst_59 : f32 to vector<16x1xf32>
    %144 = arith.divf %142, %143 : vector<16x1xf32>
    %145 = arith.mulf %139, %139 : vector<16x1xf32>
    %146 = arith.subf %144, %145 : vector<16x1xf32>
    %147 = vector.broadcast %139 : vector<16x1xf32> to vector<16x32xf32>
    %148 = arith.subf %133, %147 : vector<16x32xf32>
    %cst_60 = arith.constant 9.99999974E-6 : f32
    %149 = vector.broadcast %cst_60 : f32 to vector<16x1xf32>
    %150 = arith.addf %146, %149 : vector<16x1xf32>
    %151 = math.rsqrt %150 : vector<16x1xf32>
    %152 = vector.broadcast %151 : vector<16x1xf32> to vector<16x32xf32>
    %153 = arith.mulf %148, %152 : vector<16x32xf32>
    %154 = vector.broadcast %134 : vector<1x32xf32> to vector<16x32xf32>
    %155 = arith.mulf %153, %154 : vector<16x32xf32>
    %156 = vector.broadcast %135 : vector<1x32xf32> to vector<16x32xf32>
    %157 = arith.addf %155, %156 : vector<16x32xf32>
    %c0_61 = arith.constant 0 : index
    %c0_62 = arith.constant 0 : index
    %158 = vector.load %arg14[%c0_61, %c0_62] : memref<32x4xf32, #tpu.memory_space<vmem>>, vector<32x4xf32>
    %cst_63 = arith.constant dense<0.000000e+00> : vector<16x4xf32>
    %159 = tpu.matmul %157, %158, %cst_63 {dimension_numbers = #tpu.dot_dimension_numbers<[1], [0], [0], [1], [0, 0, 1, 1], [], []>} : vector<16x32xf32>, vector<32x4xf32>, vector<16x4xf32> -> vector<16x4xf32>
    %160 = vector.extract_strided_slice %159 {offsets = [0, 0], sizes = [8, 4], strides = [1, 1]} : vector<16x4xf32> to vector<8x4xf32>
    %cst_64 = arith.constant dense<0.000000e+00> : vector<4xf32>
    %161 = vector.multi_reduction <add>, %160, %cst_64 [0] : vector<8x4xf32> to vector<4xf32>
    %162 = vector.shape_cast %161 : vector<4xf32> to vector<1x4xf32>
    %cst_65 = arith.constant 8.000000e+00 : f32
    %163 = vector.broadcast %cst_65 : f32 to vector<1x4xf32>
    %164 = arith.divf %162, %163 : vector<1x4xf32>
    %165 = vector.extract_strided_slice %159 {offsets = [8, 0], sizes = [8, 4], strides = [1, 1]} : vector<16x4xf32> to vector<8x4xf32>
    %cst_66 = arith.constant dense<0.000000e+00> : vector<4xf32>
    %166 = vector.multi_reduction <add>, %165, %cst_66 [0] : vector<8x4xf32> to vector<4xf32>
    %167 = vector.shape_cast %166 : vector<4xf32> to vector<1x4xf32>
    %cst_67 = arith.constant 8.000000e+00 : f32
    %168 = vector.broadcast %cst_67 : f32 to vector<1x4xf32>
    %169 = arith.divf %167, %168 : vector<1x4xf32>
    %170 = tpu.concatenate %164, %169 in 0 : vector<1x4xf32>, vector<1x4xf32> -> vector<2x4xf32>
    %c0_68 = arith.constant 0 : index
    %c0_69 = arith.constant 0 : index
    %171 = vector.load %arg15[%c0_68, %c0_69] : memref<1x4xf32, #tpu.memory_space<vmem>>, vector<1x4xf32>
    %172 = vector.broadcast %171 : vector<1x4xf32> to vector<2x4xf32>
    %173 = arith.addf %170, %172 : vector<2x4xf32>
    %c0_70 = arith.constant 0 : index
    %c0_71 = arith.constant 0 : index
    %174 = vector.load %arg16[%c0_70, %c0_71] : memref<2x4xf32, #tpu.memory_space<vmem>>, vector<2x4xf32>
    tpu.vector_store %arg16[%c0_70, %c0_71], %173 {strides = array<i32>} : memref<2x4xf32, #tpu.memory_space<vmem>>, vector<2x4xf32>,
    return
  }
}

</mosaic_0001>

<llo_original>
// kernel: tpu_custom_call.1
$region0: #{tpu_custom_call.1}
  #allocation0 [shape = 'u32[]', space=smem, size = 0x4, offset = 0x4, fixed_abs, tag = 'smem constant byte address 0x4 - core index']
  #allocation1 [shape = 'u32[144,128]{1,0:T(1,128)}', space=vmem, size = 0x12000, scoped, tag = 'internal scratch']
  %s0 = inlined_call_operand.vmem [shape: f32[16,32], index: 0, kind: input, shape index: {}]
  %s1 = inlined_call_operand.hbm [shape: f32[16,16], index: 1, kind: input, shape index: {}]
  %s2 = inlined_call_operand.vmem [shape: f32[32,96], index: 2, kind: input, shape index: {}]
  %s3 = inlined_call_operand.vmem [shape: f32[1,96], index: 3, kind: input, shape index: {}]
  %s4 = inlined_call_operand.vmem [shape: f32[32,32], index: 4, kind: input, shape index: {}]
  %s5 = inlined_call_operand.vmem [shape: f32[1,32], index: 5, kind: input, shape index: {}]
  %s6 = inlined_call_operand.vmem [shape: f32[1,32], index: 6, kind: input, shape index: {}]
  %s7 = inlined_call_operand.vmem [shape: f32[1,32], index: 7, kind: input, shape index: {}]
  %s8 = inlined_call_operand.vmem [shape: f32[32,64], index: 8, kind: input, shape index: {}]
  %s9 = inlined_call_operand.vmem [shape: f32[1,64], index: 9, kind: input, shape index: {}]
  %s10 = inlined_call_operand.vmem [shape: f32[64,32], index: 10, kind: input, shape index: {}]
  %s11 = inlined_call_operand.vmem [shape: f32[1,32], index: 11, kind: input, shape index: {}]
  %s12 = inlined_call_operand.vmem [shape: f32[1,32], index: 12, kind: input, shape index: {}]
  %s13 = inlined_call_operand.vmem [shape: f32[1,32], index: 13, kind: input, shape index: {}]
  %s14 = inlined_call_operand.vmem [shape: f32[32,4], index: 14, kind: input, shape index: {}]
  %s15 = inlined_call_operand.vmem [shape: f32[1,4], index: 15, kind: input, shape index: {}]
  %s16 = inlined_call_operand.hbm [shape: f32[2,4], index: 16, kind: output, shape index: {}]
  %s17 = sld [smem:[#allocation0]]
  $region78: #{tpu_custom_call.1} parent=0
    _
  %s19 = ssub.s32 1, %s17
  %s20 = scalar_select 0, %s19, %s17
  $region1: #{tpu_custom_call.1} parent=0
    #allocation2 [shape = 'u8[8192]{0}', space=vmem, size = 0x2000, scoped, tag = 'input window, operand 1, single buffered']
    #allocation3 [shape = 's32[1]{0}', space=sflag, size = 0x4, scoped, tag = 'scoped memory for tpu_custom_call.1']
    #allocation4 [shape = 's32[1]{0}', space=sflag, size = 0x4, scoped, tag = 'scoped memory for tpu_custom_call.1']
    #allocation5 [shape = 'u8[1024]{0}', space=vmem, size = 0x400, scoped, tag = 'output window, operand 0, single buffered']
    %21 = vsyncpa [#allocation3], 0
    %22 = vsyncpa [#allocation4], 0
    // Predicated region
    $region2: #{tpu_custom_call.1} parent=1 // pred_check
      _
    $region3: #{tpu_custom_call.1} parent=1 // pred_check_branch
      %24 = sbr.rel (0) target = $region5
    $region4: #{tpu_custom_call.1} parent=1 // pred_region
      _
    $region5: #{tpu_custom_call.1} parent=1 // pred_fallthru
      _
    // Predicated region
    $region6: #{tpu_custom_call.1} parent=1 // pred_check
      _
    $region7: #{tpu_custom_call.1} parent=1 // pred_check_branch
      %26 = sbr.rel (0) target = $region9
    $region8: #{tpu_custom_call.1} parent=1 // pred_region
      %s28 = ssub.s32 256, 256
      %29 = vsyncadd [#allocation3], %s28
      %s30 = sshll.u32 [#allocation2], 4
      %s31 = int_to_ptr.vmem [resolvable:$true] %s30
      %36 = dma.hbm_to_vmem [thread:$0]  %s1, 256, %s31, [#allocation3], 128, 128, 8
    $region9: #{tpu_custom_call.1} parent=1 // pred_fallthru
      _
    // Predicated region
    $region10: #{tpu_custom_call.1} parent=1 // pred_check
      _
    $region11: #{tpu_custom_call.1} parent=1 // pred_check_branch
      %38 = sbr.rel (0) target = $region13
    $region12: #{tpu_custom_call.1} parent=1 // pred_region
      _
    $region13: #{tpu_custom_call.1} parent=1 // pred_fallthru
      _
    // Predicated region
    $region14: #{tpu_custom_call.1} parent=1 // pred_check
      _
    $region15: #{tpu_custom_call.1} parent=1 // pred_check_branch
      %40 = sbr.rel (0) target = $region17
    $region16: #{tpu_custom_call.1} parent=1 // pred_region
      _
    $region17: #{tpu_custom_call.1} parent=1 // pred_fallthru
      _
    // Predicated region
    $region18: #{tpu_custom_call.1} parent=1 // pred_check
      _
    $region19: #{tpu_custom_call.1} parent=1 // pred_check_branch
      %42 = sbr.rel (0) target = $region21
    $region20: #{tpu_custom_call.1} parent=1 // pred_region
      _
    $region21: #{tpu_custom_call.1} parent=1 // pred_fallthru
      _
    // Predicated region
    $region22: #{tpu_custom_call.1} parent=1 // pred_check
      _
    $region23: #{tpu_custom_call.1} parent=1 // pred_check_branch
      %44 = sbr.rel (0) target = $region25
    $region24: #{tpu_custom_call.1} parent=1 // pred_region
      _
    $region25: #{tpu_custom_call.1} parent=1 // pred_fallthru
      _
    // Predicated region
    $region26: #{tpu_custom_call.1} parent=1 // pred_check
      _
    $region27: #{tpu_custom_call.1} parent=1 // pred_check_branch
      %46 = sbr.rel (0) target = $region29
    $region28: #{tpu_custom_call.1} parent=1 // pred_region
      _
    $region29: #{tpu_custom_call.1} parent=1 // pred_fallthru
      _
    // Predicated region
    $region30: #{tpu_custom_call.1} parent=1 // pred_check
      _
    $region31: #{tpu_custom_call.1} parent=1 // pred_check_branch
      %48 = sbr.rel (0) target = $region33
    $region32: #{tpu_custom_call.1} parent=1 // pred_region
      _
    $region33: #{tpu_custom_call.1} parent=1 // pred_fallthru
      _
    // Predicated region
    $region34: #{tpu_custom_call.1} parent=1 // pred_check
      _
    $region35: #{tpu_custom_call.1} parent=1 // pred_check_branch
      %50 = sbr.rel (0) target = $region37
    $region36: #{tpu_custom_call.1} parent=1 // pred_region
      _
    $region37: #{tpu_custom_call.1} parent=1 // pred_fallthru
      _
    // Predicated region
    $region38: #{tpu_custom_call.1} parent=1 // pred_check
      _
    $region39: #{tpu_custom_call.1} parent=1 // pred_check_branch
      %52 = sbr.rel (0) target = $region41
    $region40: #{tpu_custom_call.1} parent=1 // pred_region
      _
    $region41: #{tpu_custom_call.1} parent=1 // pred_fallthru
      _
    // Predicated region
    $region42: #{tpu_custom_call.1} parent=1 // pred_check
      _
    $region43: #{tpu_custom_call.1} parent=1 // pred_check_branch
      %54 = sbr.rel (0) target = $region45
    $region44: #{tpu_custom_call.1} parent=1 // pred_region
      _
    $region45: #{tpu_custom_call.1} parent=1 // pred_fallthru
      _
    // Predicated region
    $region46: #{tpu_custom_call.1} parent=1 // pred_check
      _
    $region47: #{tpu_custom_call.1} parent=1 // pred_check_branch
      %56 = sbr.rel (0) target = $region49
    $region48: #{tpu_custom_call.1} parent=1 // pred_region
      _
    $region49: #{tpu_custom_call.1} parent=1 // pred_fallthru
      _
    // Predicated region
    $region50: #{tpu_custom_call.1} parent=1 // pred_check
      _
    $region51: #{tpu_custom_call.1} parent=1 // pred_check_branch
      %58 = sbr.rel (0) target = $region53
    $region52: #{tpu_custom_call.1} parent=1 // pred_region
      _
    $region53: #{tpu_custom_call.1} parent=1 // pred_fallthru
      _
    // Predicated region
    $region54: #{tpu_custom_call.1} parent=1 // pred_check
      _
    $region55: #{tpu_custom_call.1} parent=1 // pred_check_branch
      %60 = sbr.rel (0) target = $region57
    $region56: #{tpu_custom_call.1} parent=1 // pred_region
      _
    $region57: #{tpu_custom_call.1} parent=1 // pred_fallthru
      _
    // Predicated region
    $region58: #{tpu_custom_call.1} parent=1 // pred_check
      _
    $region59: #{tpu_custom_call.1} parent=1 // pred_check_branch
      %62 = sbr.rel (0) target = $region61
    $region60: #{tpu_custom_call.1} parent=1 // pred_region
      _
    $region61: #{tpu_custom_call.1} parent=1 // pred_fallthru
      _
    // Predicated region
    $region62: #{tpu_custom_call.1} parent=1 // pred_check
      _
    $region63: #{tpu_custom_call.1} parent=1 // pred_check_branch
      %64 = sbr.rel (0) target = $region65
    $region64: #{tpu_custom_call.1} parent=1 // pred_region
      _
    $region65: #{tpu_custom_call.1} parent=1 // pred_fallthru
      _
    // Predicated region
    $region66: #{tpu_custom_call.1} parent=1 // pred_check
      _
    $region67: #{tpu_custom_call.1} parent=1 // pred_check_branch
      %66 = sbr.rel (0) target = $region69
    $region68: #{tpu_custom_call.1} parent=1 // pred_region
      %67 = dma.done [#allocation3], 256
    $region69: #{tpu_custom_call.1} parent=1 // pred_fallthru
      _
    %v68 = vld [vmem:[%s0] sm:$0xff]
    %v69 = vld [vmem:[%s0 + $0x8] sm:$0xff]
    %v70 = vld [vmem:[#allocation2] sm:$0xff]
    %v71 = vld [vmem:[#allocation2 + $0x8] sm:$0xff]
    %v72 = vld [vmem:[%s2] sm:$0xff]
    %v73 = vld [vmem:[%s2 + $0x8] sm:$0xff]
    %v74 = vld [vmem:[%s2 + $0x10] sm:$0xff]
    %v75 = vld [vmem:[%s2 + $0x18] sm:$0xff]
    %v76 = vld [vmem:[%s3] sm:$0x1]
    %v78 = vlaneseq
    %v79 = vshrl.u32 %v78, 7
    %v80 = vsub.s32 0, %v79
    %v81 = vrot.slane %v76, %v80
    %vm83 = vcmask 261120
    %v85 = vsel %vm83, %v68, 0
    %v88 = vsel %vm83, %v69, 0
    %90 = vmatprep.subr.mxu0 0.0
    %91 = vmatpush1.msra.mxu0 %v72
    %92 = vmatprep.subr.mxu0 0.0
    %93 = vmatpush1.msra.mxu0 %v73
    %94 = vmatprep.subr.mxu0 0.0
    %95 = vmatpush1.msra.mxu0 %v74
    %96 = vmatprep.subr.mxu0 0.0
    %97 = vmatpush1.msra.mxu0 %v75
    %98 = vmatprep.subr.mxu0 0.0
    %99 = vmatpush1.msra.mxu0 0.0
    %100 = vmatprep.subr.mxu0 0.0
    %101 = vmatpush1.msra.mxu0 0.0
    %102 = vmatprep.subr.mxu0 0.0
    %103 = vmatpush1.msra.mxu0 0.0
    %104 = vmatprep.subr.mxu0 0.0
    %105 = vmatpush1.msra.mxu0 0.0
    %106 = vmatprep.subr.mxu0 0.0
    %107 = vmatpush1.msra.mxu0 0.0
    %108 = vmatprep.subr.mxu0 0.0
    %109 = vmatpush1.msra.mxu0 0.0
    %110 = vmatprep.subr.mxu0 0.0
    %111 = vmatpush1.msra.mxu0 0.0
    %112 = vmatprep.subr.mxu0 0.0
    %113 = vmatpush1.msra.mxu0 0.0
    %114 = vmatprep.subr.mxu0 0.0
    %115 = vmatpush1.msra.mxu0 0.0
    %116 = vmatprep.subr.mxu0 0.0
    %117 = vmatpush1.msra.mxu0 0.0
    %118 = vmatprep.subr.mxu0 0.0
    %119 = vmatpush1.msra.mxu0 0.0
    %120 = vmatprep.subr.mxu0 0.0
    %121 = vmatpush1.msra.mxu0 0.0
    %122 = vmatprep.subr.mxu0 0.0
    %123 = vmatpush1.msra.mxu0 0.0
    %124 = vmatprep.subr.mxu0 0.0
    %125 = vmatpush1.msra.mxu0 0.0
    %126 = vmatprep.subr.mxu0 0.0
    %127 = vmatpush1.msra.mxu0 0.0
    %128 = vmatprep.subr.mxu0 0.0
    %129 = vmatpush1.msra.mxu0 0.0
    %130 = vmatprep.subr.mxu0 0.0
    %131 = vmatpush1.msra.mxu0 0.0
    %132 = vmatprep.subr.mxu0 0.0
    %133 = vmatpush1.msra.mxu0 0.0
    %134 = vmatprep.subr.mxu0 0.0
    %135 = vmatpush1.msra.mxu0 0.0
    %136 = vmatprep.subr.mxu0 0.0
    %137 = vmatpush1.msra.mxu0 0.0
    %138 = vmatprep.subr.mxu0 0.0
    %139 = vmatpush1.msra.mxu0 0.0
    %140 = vmatprep.subr.mxu0 0.0
    %141 = vmatpush1.msra.mxu0 0.0
    %142 = vmatprep.subr.mxu0 0.0
    %143 = vmatpush1.msra.mxu0 0.0
    %144 = vmatprep.subr.mxu0 0.0
    %145 = vmatpush1.msra.mxu0 0.0
    %146 = vmatprep.subr.mxu0 0.0
    %147 = vmatpush1.msra.mxu0 0.0
    %148 = vmatprep.subr.mxu0 0.0
    %149 = vmatpush1.msra.mxu0 0.0
    %150 = vmatprep.subr.mxu0 0.0
    %151 = vmatpush1.msra.mxu0 0.0
    %152 = vmatprep.subr.mxu0 0.0
    %153 = vmatpush1.msra.mxu0 0.0
    %154 = vmatprep.mubr.f32.mxu0 0.0
    %155 = vmatmul.mubr.f32.gmra.mrb[0].mxu0 %v85
    %v156 = vpop.f32.mrb[0].mxu0
    %v157 = vadd.f32 %v81, %v156
    %v158 = vpop.f32.mrb[0].mxu0
    %159 = vmatprep.mubr.f32.mxu0 0.0
    %160 = vmatmul.mubr.f32.gmra.mrb[0].mxu0 %v88
    %v161 = vpop.f32.mrb[0].mxu0
    %v162 = vadd.f32 %v81, %v161
    %v163 = vpop.f32.mrb[0].mxu0
    %164 = vdwg.mxu0
    %167 = vrot.lane.b32.xlu0 %v157, 96
    %v168 = vpop.permute.xlu0 %167
    %169 = vrot.lane.b32.xlu0 %v162, 96
    %v170 = vpop.permute.xlu0 %169
    %vm171 = vcmask 64512
    %v172 = vsel %vm171, %v157, 0
    %v174 = vsel %vm171, %v162, 0
    %v176 = vsel %vm171, %v168, 0
    %v178 = vsel %vm171, %v170, 0
    %180 = vmatprep.subr.mxu0 0.0
    %181 = vmatpush1.xpose.msra.mxu0 %v176
    %182 = vmatprep.subr.mxu0 0.0
    %183 = vmatpush1.xpose.msra.mxu0 %v178
    %184 = vmatprep.subr.mxu0 0.0
    %185 = vmatpush1.xpose.msra.mxu0 0.0
    %186 = vmatprep.subr.mxu0 0.0
    %187 = vmatpush1.xpose.msra.mxu0 0.0
    %188 = vmatprep.subr.mxu0 0.0
    %189 = vmatpush1.xpose.msra.mxu0 0.0
    %190 = vmatprep.subr.mxu0 0.0
    %191 = vmatpush1.xpose.msra.mxu0 0.0
    %192 = vmatprep.subr.mxu0 0.0
    %193 = vmatpush1.xpose.msra.mxu0 0.0
    %194 = vmatprep.subr.mxu0 0.0
    %195 = vmatpush1.xpose.msra.mxu0 0.0
    %196 = vmatprep.subr.mxu0 0.0
    %197 = vmatpush1.xpose.msra.mxu0 0.0
    %198 = vmatprep.subr.mxu0 0.0
    %199 = vmatpush1.xpose.msra.mxu0 0.0
    %200 = vmatprep.subr.mxu0 0.0
    %201 = vmatpush1.xpose.msra.mxu0 0.0
    %202 = vmatprep.subr.mxu0 0.0
    %203 = vmatpush1.xpose.msra.mxu0 0.0
    %204 = vmatprep.subr.mxu0 0.0
    %205 = vmatpush1.xpose.msra.mxu0 0.0
    %206 = vmatprep.subr.mxu0 0.0
    %207 = vmatpush1.xpose.msra.mxu0 0.0
    %208 = vmatprep.subr.mxu0 0.0
    %209 = vmatpush1.xpose.msra.mxu0 0.0
    %210 = vmatprep.subr.mxu0 0.0
    %211 = vmatpush1.xpose.msra.mxu0 0.0
    %212 = vmatprep.subr.mxu0 0.0
    %213 = vmatpush1.xpose.msra.mxu0 0.0
    %214 = vmatprep.subr.mxu0 0.0
    %215 = vmatpush1.xpose.msra.mxu0 0.0
    %216 = vmatprep.subr.mxu0 0.0
    %217 = vmatpush1.xpose.msra.mxu0 0.0
    %218 = vmatprep.subr.mxu0 0.0
    %219 = vmatpush1.xpose.msra.mxu0 0.0
    %220 = vmatprep.subr.mxu0 0.0
    %221 = vmatpush1.xpose.msra.mxu0 0.0
    %222 = vmatprep.subr.mxu0 0.0
    %223 = vmatpush1.xpose.msra.mxu0 0.0
    %224 = vmatprep.subr.mxu0 0.0
    %225 = vmatpush1.xpose.msra.mxu0 0.0
    %226 = vmatprep.subr.mxu0 0.0
    %227 = vmatpush1.xpose.msra.mxu0 0.0
    %228 = vmatprep.subr.mxu0 0.0
    %229 = vmatpush1.xpose.msra.mxu0 0.0
    %230 = vmatprep.subr.mxu0 0.0
    %231 = vmatpush1.xpose.msra.mxu0 0.0
    %232 = vmatprep.subr.mxu0 0.0
    %233 = vmatpush1.xpose.msra.mxu0 0.0
    %234 = vmatprep.subr.mxu0 0.0
    %235 = vmatpush1.xpose.msra.mxu0 0.0
    %236 = vmatprep.subr.mxu0 0.0
    %237 = vmatpush1.xpose.msra.mxu0 0.0
    %238 = vmatprep.subr.mxu0 0.0
    %239 = vmatpush1.xpose.msra.mxu0 0.0
    %240 = vmatprep.subr.mxu0 0.0
    %241 = vmatpush1.xpose.msra.mxu0 0.0
    %242 = vmatprep.subr.mxu0 0.0
    %243 = vmatpush1.xpose.msra.mxu0 0.0
    %244 = vmatprep.mubr.f32.mxu0 0.0
    %245 = vmatmul.mubr.f32.gmra.mrb[0].mxu0 %v172
    %v246 = vpop.f32.mrb[0].mxu0
    %v247 = vadd.f32 %v70, %v246
    %v248 = vpop.f32.mrb[0].mxu0
    %249 = vmatprep.mubr.f32.mxu0 0.0
    %250 = vmatmul.mubr.f32.gmra.mrb[0].mxu0 %v174
    %v251 = vpop.f32.mrb[0].mxu0
    %v252 = vadd.f32 %v71, %v251
    %v253 = vpop.f32.mrb[0].mxu0
    %254 = vdwg.mxu0
    %vm255 = vcmask 130048
    %v256 = vsel %vm255, %v247, -inf
    %257 = vmax.xlane.f32.xlu0 %v256
    %v258 = vpop.xlane.xlu0 %257
    %v259 = vsel %vm255, %v252, -inf
    %260 = vmax.xlane.f32.xlu0 %v259
    %v261 = vpop.xlane.xlu0 %260
    %v262 = vsub.f32 %v247, %v258
    %v263 = vsub.f32 %v252, %v261
    %v264 = vmul.f32 %v262, 1.442695
    %v265 = vpow.pop %v264
    %v266 = vmul.f32 %v263, 1.442695
    %v267 = vpow.pop %v266
    %v268 = vsel %vm255, %v265, 0.0
    %269 = vadd.xlane.f32.xlu0 %v268
    %v270 = vpop.xlane.xlu0 %269
    %v271 = vsel %vm255, %v267, 0.0
    %272 = vadd.xlane.f32.xlu0 %v271
    %v273 = vpop.xlane.xlu0 %272
    %v274 = vrcp.pop %v270
    %v275 = vrcp.pop %v273
    %v276 = vmul.f32 %v270, %v274
    %v277 = vmul.f32 %v273, %v275
    %v278 = vsub.f32 2.0, %v276
    %v279 = vsub.f32 2.0, %v277
    %v280 = vmul.f32 %v274, %v278
    %v281 = vmul.f32 %v275, %v279
    %v282 = vmul.f32 %v265, %v280
    %v283 = vmul.f32 %v267, %v281
    %284 = vrot.lane.b32.xlu0 %v157, 64
    %v285 = vpop.permute.xlu0 %284
    %286 = vrot.lane.b32.xlu0 %v162, 64
    %v287 = vpop.permute.xlu0 %286
    %v291 = vsel %vm255, %v282, 0
    %v294 = vsel %vm255, %v283, 0
    %296 = vmatprep.subr.mxu0 0.0
    %297 = vmatpush1.msra.mxu0 %v285
    %298 = vmatprep.subr.mxu0 0.0
    %299 = vmatpush1.msra.mxu0 %v287
    %300 = vmatprep.subr.mxu0 0.0
    %301 = vmatpush1.msra.mxu0 0.0
    %302 = vmatprep.subr.mxu0 0.0
    %303 = vmatpush1.msra.mxu0 0.0
    %304 = vmatprep.subr.mxu0 0.0
    %305 = vmatpush1.msra.mxu0 0.0
    %306 = vmatprep.subr.mxu0 0.0
    %307 = vmatpush1.msra.mxu0 0.0
    %308 = vmatprep.subr.mxu0 0.0
    %309 = vmatpush1.msra.mxu0 0.0
    %310 = vmatprep.subr.mxu0 0.0
    %311 = vmatpush1.msra.mxu0 0.0
    %312 = vmatprep.subr.mxu0 0.0
    %313 = vmatpush1.msra.mxu0 0.0
    %314 = vmatprep.subr.mxu0 0.0
    %315 = vmatpush1.msra.mxu0 0.0
    %316 = vmatprep.subr.mxu0 0.0
    %317 = vmatpush1.msra.mxu0 0.0
    %318 = vmatprep.subr.mxu0 0.0
    %319 = vmatpush1.msra.mxu0 0.0
    %320 = vmatprep.subr.mxu0 0.0
    %321 = vmatpush1.msra.mxu0 0.0
    %322 = vmatprep.subr.mxu0 0.0
    %323 = vmatpush1.msra.mxu0 0.0
    %324 = vmatprep.subr.mxu0 0.0
    %325 = vmatpush1.msra.mxu0 0.0
    %326 = vmatprep.subr.mxu0 0.0
    %327 = vmatpush1.msra.mxu0 0.0
    %328 = vmatprep.subr.mxu0 0.0
    %329 = vmatpush1.msra.mxu0 0.0
    %330 = vmatprep.subr.mxu0 0.0
    %331 = vmatpush1.msra.mxu0 0.0
    %332 = vmatprep.subr.mxu0 0.0
    %333 = vmatpush1.msra.mxu0 0.0
    %334 = vmatprep.subr.mxu0 0.0
    %335 = vmatpush1.msra.mxu0 0.0
    %336 = vmatprep.subr.mxu0 0.0
    %337 = vmatpush1.msra.mxu0 0.0
    %338 = vmatprep.subr.mxu0 0.0
    %339 = vmatpush1.msra.mxu0 0.0
    %340 = vmatprep.subr.mxu0 0.0
    %341 = vmatpush1.msra.mxu0 0.0
    %342 = vmatprep.subr.mxu0 0.0
    %343 = vmatpush1.msra.mxu0 0.0
    %344 = vmatprep.subr.mxu0 0.0
    %345 = vmatpush1.msra.mxu0 0.0
    %346 = vmatprep.subr.mxu0 0.0
    %347 = vmatpush1.msra.mxu0 0.0
    %348 = vmatprep.subr.mxu0 0.0
    %349 = vmatpush1.msra.mxu0 0.0
    %350 = vmatprep.subr.mxu0 0.0
    %351 = vmatpush1.msra.mxu0 0.0
    %352 = vmatprep.subr.mxu0 0.0
    %353 = vmatpush1.msra.mxu0 0.0
    %354 = vmatprep.subr.mxu0 0.0
    %355 = vmatpush1.msra.mxu0 0.0
    %356 = vmatprep.subr.mxu0 0.0
    %357 = vmatpush1.msra.mxu0 0.0
    %358 = vmatprep.subr.mxu0 0.0
    %359 = vmatpush1.msra.mxu0 0.0
    %360 = vmatprep.mubr.f32.mxu0 0.0
    %361 = vmatmul.mubr.f32.gmra.mrb[0].mxu0 %v291
    %v362 = vpop.f32.mrb[0].mxu0
    %v363 = vadd.f32 0.0, %v362
    %v364 = vpop.f32.mrb[0].mxu0
    %365 = vmatprep.mubr.f32.mxu0 0.0
    %366 = vmatmul.mubr.f32.gmra.mrb[0].mxu0 %v294
    %v367 = vpop.f32.mrb[0].mxu0
    %v368 = vadd.f32 0.0, %v367
    %v369 = vpop.f32.mrb[0].mxu0
    %370 = vdwg.mxu0
    %371 = vrot.lane.b32.xlu0 %v157, 120
    %v372 = vpop.permute.xlu0 %371
    %373 = vrot.lane.b32.xlu0 %v162, 120
    %v374 = vpop.permute.xlu0 %373
    %375 = vrot.lane.b32.xlu0 %v157, 88
    %v376 = vpop.permute.xlu0 %375
    %377 = vrot.lane.b32.xlu0 %v162, 88
    %v378 = vpop.permute.xlu0 %377
    %v379 = vsel %vm171, %v372, 0
    %v381 = vsel %vm171, %v374, 0
    %v383 = vsel %vm171, %v376, 0
    %v385 = vsel %vm171, %v378, 0
    %387 = vmatprep.subr.mxu0 0.0
    %388 = vmatpush1.xpose.msra.mxu0 %v383
    %389 = vmatprep.subr.mxu0 0.0
    %390 = vmatpush1.xpose.msra.mxu0 %v385
    %391 = vmatprep.subr.mxu0 0.0
    %392 = vmatpush1.xpose.msra.mxu0 0.0
    %393 = vmatprep.subr.mxu0 0.0
    %394 = vmatpush1.xpose.msra.mxu0 0.0
    %395 = vmatprep.subr.mxu0 0.0
    %396 = vmatpush1.xpose.msra.mxu0 0.0
    %397 = vmatprep.subr.mxu0 0.0
    %398 = vmatpush1.xpose.msra.mxu0 0.0
    %399 = vmatprep.subr.mxu0 0.0
    %400 = vmatpush1.xpose.msra.mxu0 0.0
    %401 = vmatprep.subr.mxu0 0.0
    %402 = vmatpush1.xpose.msra.mxu0 0.0
    %403 = vmatprep.subr.mxu0 0.0
    %404 = vmatpush1.xpose.msra.mxu0 0.0
    %405 = vmatprep.subr.mxu0 0.0
    %406 = vmatpush1.xpose.msra.mxu0 0.0
    %407 = vmatprep.subr.mxu0 0.0
    %408 = vmatpush1.xpose.msra.mxu0 0.0
    %409 = vmatprep.subr.mxu0 0.0
    %410 = vmatpush1.xpose.msra.mxu0 0.0
    %411 = vmatprep.subr.mxu0 0.0
    %412 = vmatpush1.xpose.msra.mxu0 0.0
    %413 = vmatprep.subr.mxu0 0.0
    %414 = vmatpush1.xpose.msra.mxu0 0.0
    %415 = vmatprep.subr.mxu0 0.0
    %416 = vmatpush1.xpose.msra.mxu0 0.0
    %417 = vmatprep.subr.mxu0 0.0
    %418 = vmatpush1.xpose.msra.mxu0 0.0
    %419 = vmatprep.subr.mxu0 0.0
    %420 = vmatpush1.xpose.msra.mxu0 0.0
    %421 = vmatprep.subr.mxu0 0.0
    %422 = vmatpush1.xpose.msra.mxu0 0.0
    %423 = vmatprep.subr.mxu0 0.0
    %424 = vmatpush1.xpose.msra.mxu0 0.0
    %425 = vmatprep.subr.mxu0 0.0
    %426 = vmatpush1.xpose.msra.mxu0 0.0
    %427 = vmatprep.subr.mxu0 0.0
    %428 = vmatpush1.xpose.msra.mxu0 0.0
    %429 = vmatprep.subr.mxu0 0.0
    %430 = vmatpush1.xpose.msra.mxu0 0.0
    %431 = vmatprep.subr.mxu0 0.0
    %432 = vmatpush1.xpose.msra.mxu0 0.0
    %433 = vmatprep.subr.mxu0 0.0
    %434 = vmatpush1.xpose.msra.mxu0 0.0
    %435 = vmatprep.subr.mxu0 0.0
    %436 = vmatpush1.xpose.msra.mxu0 0.0
    %437 = vmatprep.subr.mxu0 0.0
    %438 = vmatpush1.xpose.msra.mxu0 0.0
    %439 = vmatprep.subr.mxu0 0.0
    %440 = vmatpush1.xpose.msra.mxu0 0.0
    %441 = vmatprep.subr.mxu0 0.0
    %442 = vmatpush1.xpose.msra.mxu0 0.0
    %443 = vmatprep.subr.mxu0 0.0
    %444 = vmatpush1.xpose.msra.mxu0 0.0
    %445 = vmatprep.subr.mxu0 0.0
    %446 = vmatpush1.xpose.msra.mxu0 0.0
    %447 = vmatprep.subr.mxu0 0.0
    %448 = vmatpush1.xpose.msra.mxu0 0.0
    %449 = vmatprep.subr.mxu0 0.0
    %450 = vmatpush1.xpose.msra.mxu0 0.0
    %451 = vmatprep.mubr.f32.mxu0 0.0
    %452 = vmatmul.mubr.f32.gmra.mrb[0].mxu0 %v379
    %v453 = vpop.f32.mrb[0].mxu0
    %v454 = vadd.f32 %v70, %v453
    %v455 = vpop.f32.mrb[0].mxu0
    %456 = vmatprep.mubr.f32.mxu0 0.0
    %457 = vmatmul.mubr.f32.gmra.mrb[0].mxu0 %v381
    %v458 = vpop.f32.mrb[0].mxu0
    %v459 = vadd.f32 %v71, %v458
    %v460 = vpop.f32.mrb[0].mxu0
    %461 = vdwg.mxu0
    %v462 = vsel %vm255, %v454, -inf
    %463 = vmax.xlane.f32.xlu0 %v462
    %v464 = vpop.xlane.xlu0 %463
    %v465 = vsel %vm255, %v459, -inf
    %466 = vmax.xlane.f32.xlu0 %v465
    %v467 = vpop.xlane.xlu0 %466
    %v468 = vsub.f32 %v454, %v464
    %v469 = vsub.f32 %v459, %v467
    %v470 = vmul.f32 %v468, 1.442695
    %v471 = vpow.pop %v470
    %v472 = vmul.f32 %v469, 1.442695
    %v473 = vpow.pop %v472
    %v474 = vsel %vm255, %v471, 0.0
    %475 = vadd.xlane.f32.xlu0 %v474
    %v476 = vpop.xlane.xlu0 %475
    %v477 = vsel %vm255, %v473, 0.0
    %478 = vadd.xlane.f32.xlu0 %v477
    %v479 = vpop.xlane.xlu0 %478
    %v480 = vrcp.pop %v476
    %v481 = vrcp.pop %v479
    %v482 = vmul.f32 %v476, %v480
    %v483 = vmul.f32 %v479, %v481
    %v484 = vsub.f32 2.0, %v482
    %v485 = vsub.f32 2.0, %v483
    %v486 = vmul.f32 %v480, %v484
    %v487 = vmul.f32 %v481, %v485
    %v488 = vmul.f32 %v471, %v486
    %v489 = vmul.f32 %v473, %v487
    %490 = vrot.lane.b32.xlu0 %v157, 56
    %v491 = vpop.permute.xlu0 %490
    %492 = vrot.lane.b32.xlu0 %v162, 56
    %v493 = vpop.permute.xlu0 %492
    %v497 = vsel %vm255, %v488, 0
    %v500 = vsel %vm255, %v489, 0
    %502 = vmatprep.subr.mxu0 0.0
    %503 = vmatpush1.msra.mxu0 %v491
    %504 = vmatprep.subr.mxu0 0.0
    %505 = vmatpush1.msra.mxu0 %v493
    %506 = vmatprep.subr.mxu0 0.0
    %507 = vmatpush1.msra.mxu0 0.0
    %508 = vmatprep.subr.mxu0 0.0
    %509 = vmatpush1.msra.mxu0 0.0
    %510 = vmatprep.subr.mxu0 0.0
    %511 = vmatpush1.msra.mxu0 0.0
    %512 = vmatprep.subr.mxu0 0.0
    %513 = vmatpush1.msra.mxu0 0.0
    %514 = vmatprep.subr.mxu0 0.0
    %515 = vmatpush1.msra.mxu0 0.0
    %516 = vmatprep.subr.mxu0 0.0
    %517 = vmatpush1.msra.mxu0 0.0
    %518 = vmatprep.subr.mxu0 0.0
    %519 = vmatpush1.msra.mxu0 0.0
    %520 = vmatprep.subr.mxu0 0.0
    %521 = vmatpush1.msra.mxu0 0.0
    %522 = vmatprep.subr.mxu0 0.0
    %523 = vmatpush1.msra.mxu0 0.0
    %524 = vmatprep.subr.mxu0 0.0
    %525 = vmatpush1.msra.mxu0 0.0
    %526 = vmatprep.subr.mxu0 0.0
    %527 = vmatpush1.msra.mxu0 0.0
    %528 = vmatprep.subr.mxu0 0.0
    %529 = vmatpush1.msra.mxu0 0.0
    %530 = vmatprep.subr.mxu0 0.0
    %531 = vmatpush1.msra.mxu0 0.0
    %532 = vmatprep.subr.mxu0 0.0
    %533 = vmatpush1.msra.mxu0 0.0
    %534 = vmatprep.subr.mxu0 0.0
    %535 = vmatpush1.msra.mxu0 0.0
    %536 = vmatprep.subr.mxu0 0.0
    %537 = vmatpush1.msra.mxu0 0.0
    %538 = vmatprep.subr.mxu0 0.0
    %539 = vmatpush1.msra.mxu0 0.0
    %540 = vmatprep.subr.mxu0 0.0
    %541 = vmatpush1.msra.mxu0 0.0
    %542 = vmatprep.subr.mxu0 0.0
    %543 = vmatpush1.msra.mxu0 0.0
    %544 = vmatprep.subr.mxu0 0.0
    %545 = vmatpush1.msra.mxu0 0.0
    %546 = vmatprep.subr.mxu0 0.0
    %547 = vmatpush1.msra.mxu0 0.0
    %548 = vmatprep.subr.mxu0 0.0
    %549 = vmatpush1.msra.mxu0 0.0
    %550 = vmatprep.subr.mxu0 0.0
    %551 = vmatpush1.msra.mxu0 0.0
    %552 = vmatprep.subr.mxu0 0.0
    %553 = vmatpush1.msra.mxu0 0.0
    %554 = vmatprep.subr.mxu0 0.0
    %555 = vmatpush1.msra.mxu0 0.0
    %556 = vmatprep.subr.mxu0 0.0
    %557 = vmatpush1.msra.mxu0 0.0
    %558 = vmatprep.subr.mxu0 0.0
    %559 = vmatpush1.msra.mxu0 0.0
    %560 = vmatprep.subr.mxu0 0.0
    %561 = vmatpush1.msra.mxu0 0.0
    %562 = vmatprep.subr.mxu0 0.0
    %563 = vmatpush1.msra.mxu0 0.0
    %564 = vmatprep.subr.mxu0 0.0
    %565 = vmatpush1.msra.mxu0 0.0
    %566 = vmatprep.mubr.f32.mxu0 0.0
    %567 = vmatmul.mubr.f32.gmra.mrb[0].mxu0 %v497
    %v568 = vpop.f32.mrb[0].mxu0
    %v569 = vadd.f32 0.0, %v568
    %v570 = vpop.f32.mrb[0].mxu0
    %571 = vmatprep.mubr.f32.mxu0 0.0
    %572 = vmatmul.mubr.f32.gmra.mrb[0].mxu0 %v500
    %v573 = vpop.f32.mrb[0].mxu0
    %v574 = vadd.f32 0.0, %v573
    %v575 = vpop.f32.mrb[0].mxu0
    %576 = vdwg.mxu0
    %577 = vrot.lane.b32.xlu0 %v157, 112
    %v578 = vpop.permute.xlu0 %577
    %579 = vrot.lane.b32.xlu0 %v162, 112
    %v580 = vpop.permute.xlu0 %579
    %581 = vrot.lane.b32.xlu0 %v157, 80
    %v582 = vpop.permute.xlu0 %581
    %583 = vrot.lane.b32.xlu0 %v162, 80
    %v584 = vpop.permute.xlu0 %583
    %v585 = vsel %vm171, %v578, 0
    %v587 = vsel %vm171, %v580, 0
    %v589 = vsel %vm171, %v582, 0
    %v591 = vsel %vm171, %v584, 0
    %593 = vmatprep.subr.mxu0 0.0
    %594 = vmatpush1.xpose.msra.mxu0 %v589
    %595 = vmatprep.subr.mxu0 0.0
    %596 = vmatpush1.xpose.msra.mxu0 %v591
    %597 = vmatprep.subr.mxu0 0.0
    %598 = vmatpush1.xpose.msra.mxu0 0.0
    %599 = vmatprep.subr.mxu0 0.0
    %600 = vmatpush1.xpose.msra.mxu0 0.0
    %601 = vmatprep.subr.mxu0 0.0
    %602 = vmatpush1.xpose.msra.mxu0 0.0
    %603 = vmatprep.subr.mxu0 0.0
    %604 = vmatpush1.xpose.msra.mxu0 0.0
    %605 = vmatprep.subr.mxu0 0.0
    %606 = vmatpush1.xpose.msra.mxu0 0.0
    %607 = vmatprep.subr.mxu0 0.0
    %608 = vmatpush1.xpose.msra.mxu0 0.0
    %609 = vmatprep.subr.mxu0 0.0
    %610 = vmatpush1.xpose.msra.mxu0 0.0
    %611 = vmatprep.subr.mxu0 0.0
    %612 = vmatpush1.xpose.msra.mxu0 0.0
    %613 = vmatprep.subr.mxu0 0.0
    %614 = vmatpush1.xpose.msra.mxu0 0.0
    %615 = vmatprep.subr.mxu0 0.0
    %616 = vmatpush1.xpose.msra.mxu0 0.0
    %617 = vmatprep.subr.mxu0 0.0
    %618 = vmatpush1.xpose.msra.mxu0 0.0
    %619 = vmatprep.subr.mxu0 0.0
    %620 = vmatpush1.xpose.msra.mxu0 0.0
    %621 = vmatprep.subr.mxu0 0.0
    %622 = vmatpush1.xpose.msra.mxu0 0.0
    %623 = vmatprep.subr.mxu0 0.0
    %624 = vmatpush1.xpose.msra.mxu0 0.0
    %625 = vmatprep.subr.mxu0 0.0
    %626 = vmatpush1.xpose.msra.mxu0 0.0
    %627 = vmatprep.subr.mxu0 0.0
    %628 = vmatpush1.xpose.msra.mxu0 0.0
    %629 = vmatprep.subr.mxu0 0.0
    %630 = vmatpush1.xpose.msra.mxu0 0.0
    %631 = vmatprep.subr.mxu0 0.0
    %632 = vmatpush1.xpose.msra.mxu0 0.0
    %633 = vmatprep.subr.mxu0 0.0
    %634 = vmatpush1.xpose.msra.mxu0 0.0
    %635 = vmatprep.subr.mxu0 0.0
    %636 = vmatpush1.xpose.msra.mxu0 0.0
    %637 = vmatprep.subr.mxu0 0.0
    %638 = vmatpush1.xpose.msra.mxu0 0.0
    %639 = vmatprep.subr.mxu0 0.0
    %640 = vmatpush1.xpose.msra.mxu0 0.0
    %641 = vmatprep.subr.mxu0 0.0
    %642 = vmatpush1.xpose.msra.mxu0 0.0
    %643 = vmatprep.subr.mxu0 0.0
    %644 = vmatpush1.xpose.msra.mxu0 0.0
    %645 = vmatprep.subr.mxu0 0.0
    %646 = vmatpush1.xpose.msra.mxu0 0.0
    %647 = vmatprep.subr.mxu0 0.0
    %648 = vmatpush1.xpose.msra.mxu0 0.0
    %649 = vmatprep.subr.mxu0 0.0
    %650 = vmatpush1.xpose.msra.mxu0 0.0
    %651 = vmatprep.subr.mxu0 0.0
    %652 = vmatpush1.xpose.msra.mxu0 0.0
    %653 = vmatprep.subr.mxu0 0.0
    %654 = vmatpush1.xpose.msra.mxu0 0.0
    %655 = vmatprep.subr.mxu0 0.0
    %656 = vmatpush1.xpose.msra.mxu0 0.0
    %657 = vmatprep.mubr.f32.mxu0 0.0
    %658 = vmatmul.mubr.f32.gmra.mrb[0].mxu0 %v585
    %v659 = vpop.f32.mrb[0].mxu0
    %v660 = vadd.f32 %v70, %v659
    %v661 = vpop.f32.mrb[0].mxu0
    %662 = vmatprep.mubr.f32.mxu0 0.0
    %663 = vmatmul.mubr.f32.gmra.mrb[0].mxu0 %v587
    %v664 = vpop.f32.mrb[0].mxu0
    %v665 = vadd.f32 %v71, %v664
    %v666 = vpop.f32.mrb[0].mxu0
    %667 = vdwg.mxu0
    %v668 = vsel %vm255, %v660, -inf
    %669 = vmax.xlane.f32.xlu0 %v668
    %v670 = vpop.xlane.xlu0 %669
    %v671 = vsel %vm255, %v665, -inf
    %672 = vmax.xlane.f32.xlu0 %v671
    %v673 = vpop.xlane.xlu0 %672
    %v674 = vsub.f32 %v660, %v670
    %v675 = vsub.f32 %v665, %v673
    %v676 = vmul.f32 %v674, 1.442695
    %v677 = vpow.pop %v676
    %v678 = vmul.f32 %v675, 1.442695
    %v679 = vpow.pop %v678
    %v680 = vsel %vm255, %v677, 0.0
    %681 = vadd.xlane.f32.xlu0 %v680
    %v682 = vpop.xlane.xlu0 %681
    %v683 = vsel %vm255, %v679, 0.0
    %684 = vadd.xlane.f32.xlu0 %v683
    %v685 = vpop.xlane.xlu0 %684
    %v686 = vrcp.pop %v682
    %v687 = vrcp.pop %v685
    %v688 = vmul.f32 %v682, %v686
    %v689 = vmul.f32 %v685, %v687
    %v690 = vsub.f32 2.0, %v688
    %v691 = vsub.f32 2.0, %v689
    %v692 = vmul.f32 %v686, %v690
    %v693 = vmul.f32 %v687, %v691
    %v694 = vmul.f32 %v677, %v692
    %v695 = vmul.f32 %v679, %v693
    %696 = vrot.lane.b32.xlu0 %v157, 48
    %v697 = vpop.permute.xlu0 %696
    %698 = vrot.lane.b32.xlu0 %v162, 48
    %v699 = vpop.permute.xlu0 %698
    %v703 = vsel %vm255, %v694, 0
    %v706 = vsel %vm255, %v695, 0
    %708 = vmatprep.subr.mxu0 0.0
    %709 = vmatpush1.msra.mxu0 %v697
    %710 = vmatprep.subr.mxu0 0.0
    %711 = vmatpush1.msra.mxu0 %v699
    %712 = vmatprep.subr.mxu0 0.0
    %713 = vmatpush1.msra.mxu0 0.0
    %714 = vmatprep.subr.mxu0 0.0
    %715 = vmatpush1.msra.mxu0 0.0
    %716 = vmatprep.subr.mxu0 0.0
    %717 = vmatpush1.msra.mxu0 0.0
    %718 = vmatprep.subr.mxu0 0.0
    %719 = vmatpush1.msra.mxu0 0.0
    %720 = vmatprep.subr.mxu0 0.0
    %721 = vmatpush1.msra.mxu0 0.0
    %722 = vmatprep.subr.mxu0 0.0
    %723 = vmatpush1.msra.mxu0 0.0
    %724 = vmatprep.subr.mxu0 0.0
    %725 = vmatpush1.msra.mxu0 0.0
    %726 = vmatprep.subr.mxu0 0.0
    %727 = vmatpush1.msra.mxu0 0.0
    %728 = vmatprep.subr.mxu0 0.0
    %729 = vmatpush1.msra.mxu0 0.0
    %730 = vmatprep.subr.mxu0 0.0
    %731 = vmatpush1.msra.mxu0 0.0
    %732 = vmatprep.subr.mxu0 0.0
    %733 = vmatpush1.msra.mxu0 0.0
    %734 = vmatprep.subr.mxu0 0.0
    %735 = vmatpush1.msra.mxu0 0.0
    %736 = vmatprep.subr.mxu0 0.0
    %737 = vmatpush1.msra.mxu0 0.0
    %738 = vmatprep.subr.mxu0 0.0
    %739 = vmatpush1.msra.mxu0 0.0
    %740 = vmatprep.subr.mxu0 0.0
    %741 = vmatpush1.msra.mxu0 0.0
    %742 = vmatprep.subr.mxu0 0.0
    %743 = vmatpush1.msra.mxu0 0.0
    %744 = vmatprep.subr.mxu0 0.0
    %745 = vmatpush1.msra.mxu0 0.0
    %746 = vmatprep.subr.mxu0 0.0
    %747 = vmatpush1.msra.mxu0 0.0
    %748 = vmatprep.subr.mxu0 0.0
    %749 = vmatpush1.msra.mxu0 0.0
    %750 = vmatprep.subr.mxu0 0.0
    %751 = vmatpush1.msra.mxu0 0.0
    %752 = vmatprep.subr.mxu0 0.0
    %753 = vmatpush1.msra.mxu0 0.0
    %754 = vmatprep.subr.mxu0 0.0
    %755 = vmatpush1.msra.mxu0 0.0
    %756 = vmatprep.subr.mxu0 0.0
    %757 = vmatpush1.msra.mxu0 0.0
    %758 = vmatprep.subr.mxu0 0.0
    %759 = vmatpush1.msra.mxu0 0.0
    %760 = vmatprep.subr.mxu0 0.0
    %761 = vmatpush1.msra.mxu0 0.0
    %762 = vmatprep.subr.mxu0 0.0
    %763 = vmatpush1.msra.mxu0 0.0
    %764 = vmatprep.subr.mxu0 0.0
    %765 = vmatpush1.msra.mxu0 0.0
    %766 = vmatprep.subr.mxu0 0.0
    %767 = vmatpush1.msra.mxu0 0.0
    %768 = vmatprep.subr.mxu0 0.0
    %769 = vmatpush1.msra.mxu0 0.0
    %770 = vmatprep.subr.mxu0 0.0
    %771 = vmatpush1.msra.mxu0 0.0
    %772 = vmatprep.mubr.f32.mxu0 0.0
    %773 = vmatmul.mubr.f32.gmra.mrb[0].mxu0 %v703
    %v774 = vpop.f32.mrb[0].mxu0
    %v775 = vadd.f32 0.0, %v774
    %v776 = vpop.f32.mrb[0].mxu0
    %777 = vmatprep.mubr.f32.mxu0 0.0
    %778 = vmatmul.mubr.f32.gmra.mrb[0].mxu0 %v706
    %v779 = vpop.f32.mrb[0].mxu0
    %v780 = vadd.f32 0.0, %v779
    %v781 = vpop.f32.mrb[0].mxu0
    %782 = vdwg.mxu0
    %783 = vrot.lane.b32.xlu0 %v157, 104
    %v784 = vpop.permute.xlu0 %783
    %785 = vrot.lane.b32.xlu0 %v162, 104
    %v786 = vpop.permute.xlu0 %785
    %787 = vrot.lane.b32.xlu0 %v157, 72
    %v788 = vpop.permute.xlu0 %787
    %789 = vrot.lane.b32.xlu0 %v162, 72
    %v790 = vpop.permute.xlu0 %789
    %v791 = vsel %vm171, %v784, 0
    %v793 = vsel %vm171, %v786, 0
    %v795 = vsel %vm171, %v788, 0
    %v797 = vsel %vm171, %v790, 0
    %799 = vmatprep.subr.mxu0 0.0
    %800 = vmatpush1.xpose.msra.mxu0 %v795
    %801 = vmatprep.subr.mxu0 0.0
    %802 = vmatpush1.xpose.msra.mxu0 %v797
    %803 = vmatprep.subr.mxu0 0.0
    %804 = vmatpush1.xpose.msra.mxu0 0.0
    %805 = vmatprep.subr.mxu0 0.0
    %806 = vmatpush1.xpose.msra.mxu0 0.0
    %807 = vmatprep.subr.mxu0 0.0
    %808 = vmatpush1.xpose.msra.mxu0 0.0
    %809 = vmatprep.subr.mxu0 0.0
    %810 = vmatpush1.xpose.msra.mxu0 0.0
    %811 = vmatprep.subr.mxu0 0.0
    %812 = vmatpush1.xpose.msra.mxu0 0.0
    %813 = vmatprep.subr.mxu0 0.0
    %814 = vmatpush1.xpose.msra.mxu0 0.0
    %815 = vmatprep.subr.mxu0 0.0
    %816 = vmatpush1.xpose.msra.mxu0 0.0
    %817 = vmatprep.subr.mxu0 0.0
    %818 = vmatpush1.xpose.msra.mxu0 0.0
    %819 = vmatprep.subr.mxu0 0.0
    %820 = vmatpush1.xpose.msra.mxu0 0.0
    %821 = vmatprep.subr.mxu0 0.0
    %822 = vmatpush1.xpose.msra.mxu0 0.0
    %823 = vmatprep.subr.mxu0 0.0
    %824 = vmatpush1.xpose.msra.mxu0 0.0
    %825 = vmatprep.subr.mxu0 0.0
    %826 = vmatpush1.xpose.msra.mxu0 0.0
    %827 = vmatprep.subr.mxu0 0.0
    %828 = vmatpush1.xpose.msra.mxu0 0.0
    %829 = vmatprep.subr.mxu0 0.0
    %830 = vmatpush1.xpose.msra.mxu0 0.0
    %831 = vmatprep.subr.mxu0 0.0
    %832 = vmatpush1.xpose.msra.mxu0 0.0
    %833 = vmatprep.subr.mxu0 0.0
    %834 = vmatpush1.xpose.msra.mxu0 0.0
    %835 = vmatprep.subr.mxu0 0.0
    %836 = vmatpush1.xpose.msra.mxu0 0.0
    %837 = vmatprep.subr.mxu0 0.0
    %838 = vmatpush1.xpose.msra.mxu0 0.0
    %839 = vmatprep.subr.mxu0 0.0
    %840 = vmatpush1.xpose.msra.mxu0 0.0
    %841 = vmatprep.subr.mxu0 0.0
    %842 = vmatpush1.xpose.msra.mxu0 0.0
    %843 = vmatprep.subr.mxu0 0.0
    %844 = vmatpush1.xpose.msra.mxu0 0.0
    %845 = vmatprep.subr.mxu0 0.0
    %846 = vmatpush1.xpose.msra.mxu0 0.0
    %847 = vmatprep.subr.mxu0 0.0
    %848 = vmatpush1.xpose.msra.mxu0 0.0
    %849 = vmatprep.subr.mxu0 0.0
    %850 = vmatpush1.xpose.msra.mxu0 0.0
    %851 = vmatprep.subr.mxu0 0.0
    %852 = vmatpush1.xpose.msra.mxu0 0.0
    %853 = vmatprep.subr.mxu0 0.0
    %854 = vmatpush1.xpose.msra.mxu0 0.0
    %855 = vmatprep.subr.mxu0 0.0
    %856 = vmatpush1.xpose.msra.mxu0 0.0
    %857 = vmatprep.subr.mxu0 0.0
    %858 = vmatpush1.xpose.msra.mxu0 0.0
    %859 = vmatprep.subr.mxu0 0.0
    %860 = vmatpush1.xpose.msra.mxu0 0.0
    %861 = vmatprep.subr.mxu0 0.0
    %862 = vmatpush1.xpose.msra.mxu0 0.0
    %863 = vmatprep.mubr.f32.mxu0 0.0
    %864 = vmatmul.mubr.f32.gmra.mrb[0].mxu0 %v791
    %v865 = vpop.f32.mrb[0].mxu0
    %v866 = vadd.f32 %v70, %v865
    %v867 = vpop.f32.mrb[0].mxu0
    %868 = vmatprep.mubr.f32.mxu0 0.0
    %869 = vmatmul.mubr.f32.gmra.mrb[0].mxu0 %v793
    %v870 = vpop.f32.mrb[0].mxu0
    %v871 = vadd.f32 %v71, %v870
    %v872 = vpop.f32.mrb[0].mxu0
    %873 = vdwg.mxu0
    %v874 = vsel %vm255, %v866, -inf
    %875 = vmax.xlane.f32.xlu0 %v874
    %v876 = vpop.xlane.xlu0 %875
    %v877 = vsel %vm255, %v871, -inf
    %878 = vmax.xlane.f32.xlu0 %v877
    %v879 = vpop.xlane.xlu0 %878
    %v880 = vsub.f32 %v866, %v876
    %v881 = vsub.f32 %v871, %v879
    %v882 = vmul.f32 %v880, 1.442695
    %v883 = vpow.pop %v882
    %v884 = vmul.f32 %v881, 1.442695
    %v885 = vpow.pop %v884
    %v886 = vsel %vm255, %v883, 0.0
    %887 = vadd.xlane.f32.xlu0 %v886
    %v888 = vpop.xlane.xlu0 %887
    %v889 = vsel %vm255, %v885, 0.0
    %890 = vadd.xlane.f32.xlu0 %v889
    %v891 = vpop.xlane.xlu0 %890
    %v892 = vrcp.pop %v888
    %v893 = vrcp.pop %v891
    %v894 = vmul.f32 %v888, %v892
    %v895 = vmul.f32 %v891, %v893
    %v896 = vsub.f32 2.0, %v894
    %v897 = vsub.f32 2.0, %v895
    %v898 = vmul.f32 %v892, %v896
    %v899 = vmul.f32 %v893, %v897
    %v900 = vmul.f32 %v883, %v898
    %v901 = vmul.f32 %v885, %v899
    %902 = vrot.lane.b32.xlu0 %v157, 40
    %v903 = vpop.permute.xlu0 %902
    %904 = vrot.lane.b32.xlu0 %v162, 40
    %v905 = vpop.permute.xlu0 %904
    %v909 = vsel %vm255, %v900, 0
    %v912 = vsel %vm255, %v901, 0
    %914 = vmatprep.subr.mxu0 0.0
    %915 = vmatpush1.msra.mxu0 %v903
    %916 = vmatprep.subr.mxu0 0.0
    %917 = vmatpush1.msra.mxu0 %v905
    %918 = vmatprep.subr.mxu0 0.0
    %919 = vmatpush1.msra.mxu0 0.0
    %920 = vmatprep.subr.mxu0 0.0
    %921 = vmatpush1.msra.mxu0 0.0
    %922 = vmatprep.subr.mxu0 0.0
    %923 = vmatpush1.msra.mxu0 0.0
    %924 = vmatprep.subr.mxu0 0.0
    %925 = vmatpush1.msra.mxu0 0.0
    %926 = vmatprep.subr.mxu0 0.0
    %927 = vmatpush1.msra.mxu0 0.0
    %928 = vmatprep.subr.mxu0 0.0
    %929 = vmatpush1.msra.mxu0 0.0
    %930 = vmatprep.subr.mxu0 0.0
    %931 = vmatpush1.msra.mxu0 0.0
    %932 = vmatprep.subr.mxu0 0.0
    %933 = vmatpush1.msra.mxu0 0.0
    %934 = vmatprep.subr.mxu0 0.0
    %935 = vmatpush1.msra.mxu0 0.0
    %936 = vmatprep.subr.mxu0 0.0
    %937 = vmatpush1.msra.mxu0 0.0
    %938 = vmatprep.subr.mxu0 0.0
    %939 = vmatpush1.msra.mxu0 0.0
    %940 = vmatprep.subr.mxu0 0.0
    %941 = vmatpush1.msra.mxu0 0.0
    %942 = vmatprep.subr.mxu0 0.0
    %943 = vmatpush1.msra.mxu0 0.0
    %944 = vmatprep.subr.mxu0 0.0
    %945 = vmatpush1.msra.mxu0 0.0
    %946 = vmatprep.subr.mxu0 0.0
    %947 = vmatpush1.msra.mxu0 0.0
    %948 = vmatprep.subr.mxu0 0.0
    %949 = vmatpush1.msra.mxu0 0.0
    %950 = vmatprep.subr.mxu0 0.0
    %951 = vmatpush1.msra.mxu0 0.0
    %952 = vmatprep.subr.mxu0 0.0
    %953 = vmatpush1.msra.mxu0 0.0
    %954 = vmatprep.subr.mxu0 0.0
    %955 = vmatpush1.msra.mxu0 0.0
    %956 = vmatprep.subr.mxu0 0.0
    %957 = vmatpush1.msra.mxu0 0.0
    %958 = vmatprep.subr.mxu0 0.0
    %959 = vmatpush1.msra.mxu0 0.0
    %960 = vmatprep.subr.mxu0 0.0
    %961 = vmatpush1.msra.mxu0 0.0
    %962 = vmatprep.subr.mxu0 0.0
    %963 = vmatpush1.msra.mxu0 0.0
    %964 = vmatprep.subr.mxu0 0.0
    %965 = vmatpush1.msra.mxu0 0.0
    %966 = vmatprep.subr.mxu0 0.0
    %967 = vmatpush1.msra.mxu0 0.0
    %968 = vmatprep.subr.mxu0 0.0
    %969 = vmatpush1.msra.mxu0 0.0
    %970 = vmatprep.subr.mxu0 0.0
    %971 = vmatpush1.msra.mxu0 0.0
    %972 = vmatprep.subr.mxu0 0.0
    %973 = vmatpush1.msra.mxu0 0.0
    %974 = vmatprep.subr.mxu0 0.0
    %975 = vmatpush1.msra.mxu0 0.0
    %976 = vmatprep.subr.mxu0 0.0
    %977 = vmatpush1.msra.mxu0 0.0
    %978 = vmatprep.mubr.f32.mxu0 0.0
    %979 = vmatmul.mubr.f32.gmra.mrb[0].mxu0 %v909
    %v980 = vpop.f32.mrb[0].mxu0
    %v981 = vadd.f32 0.0, %v980
    %v982 = vpop.f32.mrb[0].mxu0
    %983 = vmatprep.mubr.f32.mxu0 0.0
    %984 = vmatmul.mubr.f32.gmra.mrb[0].mxu0 %v912
    %v985 = vpop.f32.mrb[0].mxu0
    %v986 = vadd.f32 0.0, %v985
    %v987 = vpop.f32.mrb[0].mxu0
    %988 = vdwg.mxu0
    %991 = vrot.lane.b32.xlu0 %v569, 8
    %v992 = vpop.permute.xlu0 %991
    %993 = vrot.lane.b32.xlu0 %v574, 8
    %v994 = vpop.permute.xlu0 %993
    %999 = vrot.lane.b32.xlu0 %v775, 16
    %v1000 = vpop.permute.xlu0 %999
    %1001 = vrot.lane.b32.xlu0 %v780, 16
    %v1002 = vpop.permute.xlu0 %1001
    %1007 = vrot.lane.b32.xlu0 %v981, 24
    %v1008 = vpop.permute.xlu0 %1007
    %1009 = vrot.lane.b32.xlu0 %v986, 24
    %v1010 = vpop.permute.xlu0 %1009
    %v1013 = vsel %vm171, %v363, %v992
    %v1014 = vsel %vm171, %v368, %v994
    %v1015 = vsel %vm255, %v1013, %v1000
    %v1016 = vsel %vm255, %v1014, %v1002
    %vm1017 = vcmask 195584
    %v1018 = vsel %vm1017, %v1015, %v1008
    %v1019 = vsel %vm1017, %v1016, %v1010
    %v1020 = vld [vmem:[%s4] sm:$0xff]
    %v1021 = vld [vmem:[%s4 + $0x8] sm:$0xff]
    %v1022 = vld [vmem:[%s4 + $0x10] sm:$0xff]
    %v1023 = vld [vmem:[%s4 + $0x18] sm:$0xff]
    %v1024 = vld [vmem:[%s5] sm:$0x1]
    %v1026 = vlaneseq
    %v1027 = vshrl.u32 %v1026, 7
    %v1028 = vsub.s32 0, %v1027
    %v1029 = vrot.slane %v1024, %v1028
    %v1032 = vsel %vm83, %v1018, 0
    %v1035 = vsel %vm83, %v1019, 0
    %1037 = vmatprep.subr.mxu0 0.0
    %1038 = vmatpush1.msra.mxu0 %v1020
    %1039 = vmatprep.subr.mxu0 0.0
    %1040 = vmatpush1.msra.mxu0 %v1021
    %1041 = vmatprep.subr.mxu0 0.0
    %1042 = vmatpush1.msra.mxu0 %v1022
    %1043 = vmatprep.subr.mxu0 0.0
    %1044 = vmatpush1.msra.mxu0 %v1023
    %1045 = vmatprep.subr.mxu0 0.0
    %1046 = vmatpush1.msra.mxu0 0.0
    %1047 = vmatprep.subr.mxu0 0.0
    %1048 = vmatpush1.msra.mxu0 0.0
    %1049 = vmatprep.subr.mxu0 0.0
    %1050 = vmatpush1.msra.mxu0 0.0
    %1051 = vmatprep.subr.mxu0 0.0
    %1052 = vmatpush1.msra.mxu0 0.0
    %1053 = vmatprep.subr.mxu0 0.0
    %1054 = vmatpush1.msra.mxu0 0.0
    %1055 = vmatprep.subr.mxu0 0.0
    %1056 = vmatpush1.msra.mxu0 0.0
    %1057 = vmatprep.subr.mxu0 0.0
    %1058 = vmatpush1.msra.mxu0 0.0
    %1059 = vmatprep.subr.mxu0 0.0
    %1060 = vmatpush1.msra.mxu0 0.0
    %1061 = vmatprep.subr.mxu0 0.0
    %1062 = vmatpush1.msra.mxu0 0.0
    %1063 = vmatprep.subr.mxu0 0.0
    %1064 = vmatpush1.msra.mxu0 0.0
    %1065 = vmatprep.subr.mxu0 0.0
    %1066 = vmatpush1.msra.mxu0 0.0
    %1067 = vmatprep.subr.mxu0 0.0
    %1068 = vmatpush1.msra.mxu0 0.0
    %1069 = vmatprep.subr.mxu0 0.0
    %1070 = vmatpush1.msra.mxu0 0.0
    %1071 = vmatprep.subr.mxu0 0.0
    %1072 = vmatpush1.msra.mxu0 0.0
    %1073 = vmatprep.subr.mxu0 0.0
    %1074 = vmatpush1.msra.mxu0 0.0
    %1075 = vmatprep.subr.mxu0 0.0
    %1076 = vmatpush1.msra.mxu0 0.0
    %1077 = vmatprep.subr.mxu0 0.0
    %1078 = vmatpush1.msra.mxu0 0.0
    %1079 = vmatprep.subr.mxu0 0.0
    %1080 = vmatpush1.msra.mxu0 0.0
    %1081 = vmatprep.subr.mxu0 0.0
    %1082 = vmatpush1.msra.mxu0 0.0
    %1083 = vmatprep.subr.mxu0 0.0
    %1084 = vmatpush1.msra.mxu0 0.0
    %1085 = vmatprep.subr.mxu0 0.0
    %1086 = vmatpush1.msra.mxu0 0.0
    %1087 = vmatprep.subr.mxu0 0.0
    %1088 = vmatpush1.msra.mxu0 0.0
    %1089 = vmatprep.subr.mxu0 0.0
    %1090 = vmatpush1.msra.mxu0 0.0
    %1091 = vmatprep.subr.mxu0 0.0
    %1092 = vmatpush1.msra.mxu0 0.0
    %1093 = vmatprep.subr.mxu0 0.0
    %1094 = vmatpush1.msra.mxu0 0.0
    %1095 = vmatprep.subr.mxu0 0.0
    %1096 = vmatpush1.msra.mxu0 0.0
    %1097 = vmatprep.subr.mxu0 0.0
    %1098 = vmatpush1.msra.mxu0 0.0
    %1099 = vmatprep.subr.mxu0 0.0
    %1100 = vmatpush1.msra.mxu0 0.0
    %1101 = vmatprep.mubr.f32.mxu0 0.0
    %1102 = vmatmul.mubr.f32.gmra.mrb[0].mxu0 %v1032
    %v1103 = vpop.f32.mrb[0].mxu0
    %v1104 = vadd.f32 %v1029, %v1103
    %v1105 = vpop.f32.mrb[0].mxu0
    %1106 = vmatprep.mubr.f32.mxu0 0.0
    %1107 = vmatmul.mubr.f32.gmra.mrb[0].mxu0 %v1035
    %v1108 = vpop.f32.mrb[0].mxu0
    %v1109 = vadd.f32 %v1029, %v1108
    %v1110 = vpop.f32.mrb[0].mxu0
    %1111 = vdwg.mxu0
    %v1112 = vadd.f32 %v68, %v1104
    %v1113 = vadd.f32 %v69, %v1109
    %v1114 = vld [vmem:[%s6] sm:$0x1]
    %v1115 = vld [vmem:[%s7] sm:$0x1]
    %v1116 = vsel %vm83, %v1112, 0.0
    %1117 = vadd.xlane.f32.xlu0 %v1116
    %v1118 = vpop.xlane.xlu0 %1117
    %v1119 = vsel %vm83, %v1113, 0.0
    %1120 = vadd.xlane.f32.xlu0 %v1119
    %v1121 = vpop.xlane.xlu0 %1120
    %v1122 = vrcp.pop 32.0
    %v1123 = vmul.f32 %v1118, %v1122
    %v1124 = vmul.f32 %v1121, %v1122
    %v1125 = vmul.f32 %v1112, %v1112
    %v1126 = vmul.f32 %v1113, %v1113
    %v1127 = vsel %vm83, %v1125, 0.0
    %1128 = vadd.xlane.f32.xlu0 %v1127
    %v1129 = vpop.xlane.xlu0 %1128
    %v1130 = vsel %vm83, %v1126, 0.0
    %1131 = vadd.xlane.f32.xlu0 %v1130
    %v1132 = vpop.xlane.xlu0 %1131
    %v1133 = vmul.f32 %v1129, %v1122
    %v1134 = vmul.f32 %v1132, %v1122
    %v1135 = vmul.f32 %v1123, %v1123
    %v1136 = vmul.f32 %v1124, %v1124
    %v1137 = vsub.f32 %v1133, %v1135
    %v1138 = vsub.f32 %v1134, %v1136
    %v1139 = vsub.f32 %v1112, %v1123
    %v1140 = vsub.f32 %v1113, %v1124
    %v1141 = vadd.f32 %v1137, 1e-05
    %v1142 = vadd.f32 %v1138, 1e-05
    %v1143 = vrsqrt.pop %v1141
    %v1144 = vrsqrt.pop %v1142
    %v1145 = vmul.f32 %v1139, %v1143
    %v1146 = vmul.f32 %v1140, %v1144
    %v1148 = vlaneseq
    %v1149 = vshrl.u32 %v1148, 7
    %v1150 = vsub.s32 0, %v1149
    %v1151 = vrot.slane %v1114, %v1150
    %v1153 = vmul.f32 %v1145, %v1151
    %v1154 = vmul.f32 %v1146, %v1151
    %v1156 = vlaneseq
    %v1157 = vshrl.u32 %v1156, 7
    %v1158 = vsub.s32 0, %v1157
    %v1159 = vrot.slane %v1115, %v1158
    %v1161 = vadd.f32 %v1153, %v1159
    %v1162 = vadd.f32 %v1154, %v1159
    %v1163 = vld [vmem:[%s8] sm:$0xff]
    %v1164 = vld [vmem:[%s8 + $0x8] sm:$0xff]
    %v1165 = vld [vmem:[%s8 + $0x10] sm:$0xff]
    %v1166 = vld [vmem:[%s8 + $0x18] sm:$0xff]
    %v1167 = vld [vmem:[%s9] sm:$0x1]
    %v1169 = vlaneseq
    %v1170 = vshrl.u32 %v1169, 7
    %v1171 = vsub.s32 0, %v1170
    %v1172 = vrot.slane %v1167, %v1171
    %v1175 = vsel %vm83, %v1161, 0
    %v1178 = vsel %vm83, %v1162, 0
    %1180 = vmatprep.subr.mxu0 0.0
    %1181 = vmatpush1.msra.mxu0 %v1163
    %1182 = vmatprep.subr.mxu0 0.0
    %1183 = vmatpush1.msra.mxu0 %v1164
    %1184 = vmatprep.subr.mxu0 0.0
    %1185 = vmatpush1.msra.mxu0 %v1165
    %1186 = vmatprep.subr.mxu0 0.0
    %1187 = vmatpush1.msra.mxu0 %v1166
    %1188 = vmatprep.subr.mxu0 0.0
    %1189 = vmatpush1.msra.mxu0 0.0
    %1190 = vmatprep.subr.mxu0 0.0
    %1191 = vmatpush1.msra.mxu0 0.0
    %1192 = vmatprep.subr.mxu0 0.0
    %1193 = vmatpush1.msra.mxu0 0.0
    %1194 = vmatprep.subr.mxu0 0.0
    %1195 = vmatpush1.msra.mxu0 0.0
    %1196 = vmatprep.subr.mxu0 0.0
    %1197 = vmatpush1.msra.mxu0 0.0
    %1198 = vmatprep.subr.mxu0 0.0
    %1199 = vmatpush1.msra.mxu0 0.0
    %1200 = vmatprep.subr.mxu0 0.0
    %1201 = vmatpush1.msra.mxu0 0.0
    %1202 = vmatprep.subr.mxu0 0.0
    %1203 = vmatpush1.msra.mxu0 0.0
    %1204 = vmatprep.subr.mxu0 0.0
    %1205 = vmatpush1.msra.mxu0 0.0
    %1206 = vmatprep.subr.mxu0 0.0
    %1207 = vmatpush1.msra.mxu0 0.0
    %1208 = vmatprep.subr.mxu0 0.0
    %1209 = vmatpush1.msra.mxu0 0.0
    %1210 = vmatprep.subr.mxu0 0.0
    %1211 = vmatpush1.msra.mxu0 0.0
    %1212 = vmatprep.subr.mxu0 0.0
    %1213 = vmatpush1.msra.mxu0 0.0
    %1214 = vmatprep.subr.mxu0 0.0
    %1215 = vmatpush1.msra.mxu0 0.0
    %1216 = vmatprep.subr.mxu0 0.0
    %1217 = vmatpush1.msra.mxu0 0.0
    %1218 = vmatprep.subr.mxu0 0.0
    %1219 = vmatpush1.msra.mxu0 0.0
    %1220 = vmatprep.subr.mxu0 0.0
    %1221 = vmatpush1.msra.mxu0 0.0
    %1222 = vmatprep.subr.mxu0 0.0
    %1223 = vmatpush1.msra.mxu0 0.0
    %1224 = vmatprep.subr.mxu0 0.0
    %1225 = vmatpush1.msra.mxu0 0.0
    %1226 = vmatprep.subr.mxu0 0.0
    %1227 = vmatpush1.msra.mxu0 0.0
    %1228 = vmatprep.subr.mxu0 0.0
    %1229 = vmatpush1.msra.mxu0 0.0
    %1230 = vmatprep.subr.mxu0 0.0
    %1231 = vmatpush1.msra.mxu0 0.0
    %1232 = vmatprep.subr.mxu0 0.0
    %1233 = vmatpush1.msra.mxu0 0.0
    %1234 = vmatprep.subr.mxu0 0.0
    %1235 = vmatpush1.msra.mxu0 0.0
    %1236 = vmatprep.subr.mxu0 0.0
    %1237 = vmatpush1.msra.mxu0 0.0
    %1238 = vmatprep.subr.mxu0 0.0
    %1239 = vmatpush1.msra.mxu0 0.0
    %1240 = vmatprep.subr.mxu0 0.0
    %1241 = vmatpush1.msra.mxu0 0.0
    %1242 = vmatprep.subr.mxu0 0.0
    %1243 = vmatpush1.msra.mxu0 0.0
    %1244 = vmatprep.mubr.f32.mxu0 0.0
    %1245 = vmatmul.mubr.f32.gmra.mrb[0].mxu0 %v1175
    %v1246 = vpop.f32.mrb[0].mxu0
    %v1247 = vadd.f32 %v1172, %v1246
    %v1248 = vpop.f32.mrb[0].mxu0
    %1249 = vmatprep.mubr.f32.mxu0 0.0
    %1250 = vmatmul.mubr.f32.gmra.mrb[0].mxu0 %v1178
    %v1251 = vpop.f32.mrb[0].mxu0
    %v1252 = vadd.f32 %v1172, %v1251
    %v1253 = vpop.f32.mrb[0].mxu0
    %1254 = vdwg.mxu0
    %v1255 = vmax.f32 %v1247, 0.0
    %v1256 = vmax.f32 %v1252, 0.0
    %v1257 = vld [vmem:[%s10] sm:$0xff]
    %v1258 = vld [vmem:[%s10 + $0x8] sm:$0xff]
    %v1259 = vld [vmem:[%s10 + $0x10] sm:$0xff]
    %v1260 = vld [vmem:[%s10 + $0x18] sm:$0xff]
    %v1261 = vld [vmem:[%s10 + $0x20] sm:$0xff]
    %v1262 = vld [vmem:[%s10 + $0x28] sm:$0xff]
    %v1263 = vld [vmem:[%s10 + $0x30] sm:$0xff]
    %v1264 = vld [vmem:[%s10 + $0x38] sm:$0xff]
    %v1265 = vld [vmem:[%s11] sm:$0x1]
    %v1267 = vlaneseq
    %v1268 = vshrl.u32 %v1267, 7
    %v1269 = vsub.s32 0, %v1268
    %v1270 = vrot.slane %v1265, %v1269
    %vm1272 = vcmask 523264
    %v1274 = vsel %vm1272, %v1255, 0
    %v1277 = vsel %vm1272, %v1256, 0
    %1279 = vmatprep.subr.mxu0 0.0
    %1280 = vmatpush1.msra.mxu0 %v1257
    %1281 = vmatprep.subr.mxu0 0.0
    %1282 = vmatpush1.msra.mxu0 %v1258
    %1283 = vmatprep.subr.mxu0 0.0
    %1284 = vmatpush1.msra.mxu0 %v1259
    %1285 = vmatprep.subr.mxu0 0.0
    %1286 = vmatpush1.msra.mxu0 %v1260
    %1287 = vmatprep.subr.mxu0 0.0
    %1288 = vmatpush1.msra.mxu0 %v1261
    %1289 = vmatprep.subr.mxu0 0.0
    %1290 = vmatpush1.msra.mxu0 %v1262
    %1291 = vmatprep.subr.mxu0 0.0
    %1292 = vmatpush1.msra.mxu0 %v1263
    %1293 = vmatprep.subr.mxu0 0.0
    %1294 = vmatpush1.msra.mxu0 %v1264
    %1295 = vmatprep.subr.mxu0 0.0
    %1296 = vmatpush1.msra.mxu0 0.0
    %1297 = vmatprep.subr.mxu0 0.0
    %1298 = vmatpush1.msra.mxu0 0.0
    %1299 = vmatprep.subr.mxu0 0.0
    %1300 = vmatpush1.msra.mxu0 0.0
    %1301 = vmatprep.subr.mxu0 0.0
    %1302 = vmatpush1.msra.mxu0 0.0
    %1303 = vmatprep.subr.mxu0 0.0
    %1304 = vmatpush1.msra.mxu0 0.0
    %1305 = vmatprep.subr.mxu0 0.0
    %1306 = vmatpush1.msra.mxu0 0.0
    %1307 = vmatprep.subr.mxu0 0.0
    %1308 = vmatpush1.msra.mxu0 0.0
    %1309 = vmatprep.subr.mxu0 0.0
    %1310 = vmatpush1.msra.mxu0 0.0
    %1311 = vmatprep.subr.mxu0 0.0
    %1312 = vmatpush1.msra.mxu0 0.0
    %1313 = vmatprep.subr.mxu0 0.0
    %1314 = vmatpush1.msra.mxu0 0.0
    %1315 = vmatprep.subr.mxu0 0.0
    %1316 = vmatpush1.msra.mxu0 0.0
    %1317 = vmatprep.subr.mxu0 0.0
    %1318 = vmatpush1.msra.mxu0 0.0
    %1319 = vmatprep.subr.mxu0 0.0
    %1320 = vmatpush1.msra.mxu0 0.0
    %1321 = vmatprep.subr.mxu0 0.0
    %1322 = vmatpush1.msra.mxu0 0.0
    %1323 = vmatprep.subr.mxu0 0.0
    %1324 = vmatpush1.msra.mxu0 0.0
    %1325 = vmatprep.subr.mxu0 0.0
    %1326 = vmatpush1.msra.mxu0 0.0
    %1327 = vmatprep.subr.mxu0 0.0
    %1328 = vmatpush1.msra.mxu0 0.0
    %1329 = vmatprep.subr.mxu0 0.0
    %1330 = vmatpush1.msra.mxu0 0.0
    %1331 = vmatprep.subr.mxu0 0.0
    %1332 = vmatpush1.msra.mxu0 0.0
    %1333 = vmatprep.subr.mxu0 0.0
    %1334 = vmatpush1.msra.mxu0 0.0
    %1335 = vmatprep.subr.mxu0 0.0
    %1336 = vmatpush1.msra.mxu0 0.0
    %1337 = vmatprep.subr.mxu0 0.0
    %1338 = vmatpush1.msra.mxu0 0.0
    %1339 = vmatprep.subr.mxu0 0.0
    %1340 = vmatpush1.msra.mxu0 0.0
    %1341 = vmatprep.subr.mxu0 0.0
    %1342 = vmatpush1.msra.mxu0 0.0
    %1343 = vmatprep.mubr.f32.mxu0 0.0
    %1344 = vmatmul.mubr.f32.gmra.mrb[0].mxu0 %v1274
    %v1345 = vpop.f32.mrb[0].mxu0
    %v1346 = vadd.f32 %v1270, %v1345
    %v1347 = vpop.f32.mrb[0].mxu0
    %1348 = vmatprep.mubr.f32.mxu0 0.0
    %1349 = vmatmul.mubr.f32.gmra.mrb[0].mxu0 %v1277
    %v1350 = vpop.f32.mrb[0].mxu0
    %v1351 = vadd.f32 %v1270, %v1350
    %v1352 = vpop.f32.mrb[0].mxu0
    %1353 = vdwg.mxu0
    %v1354 = vadd.f32 %v1161, %v1346
    %v1355 = vadd.f32 %v1162, %v1351
    %v1356 = vld [vmem:[%s12] sm:$0x1]
    %v1357 = vld [vmem:[%s13] sm:$0x1]
    %v1358 = vsel %vm83, %v1354, 0.0
    %1359 = vadd.xlane.f32.xlu0 %v1358
    %v1360 = vpop.xlane.xlu0 %1359
    %v1361 = vsel %vm83, %v1355, 0.0
    %1362 = vadd.xlane.f32.xlu0 %v1361
    %v1363 = vpop.xlane.xlu0 %1362
    %v1364 = vmul.f32 %v1360, %v1122
    %v1365 = vmul.f32 %v1363, %v1122
    %v1366 = vmul.f32 %v1354, %v1354
    %v1367 = vmul.f32 %v1355, %v1355
    %v1368 = vsel %vm83, %v1366, 0.0
    %1369 = vadd.xlane.f32.xlu0 %v1368
    %v1370 = vpop.xlane.xlu0 %1369
    %v1371 = vsel %vm83, %v1367, 0.0
    %1372 = vadd.xlane.f32.xlu0 %v1371
    %v1373 = vpop.xlane.xlu0 %1372
    %v1374 = vmul.f32 %v1370, %v1122
    %v1375 = vmul.f32 %v1373, %v1122
    %v1376 = vmul.f32 %v1364, %v1364
    %v1377 = vmul.f32 %v1365, %v1365
    %v1378 = vsub.f32 %v1374, %v1376
    %v1379 = vsub.f32 %v1375, %v1377
    %v1380 = vsub.f32 %v1354, %v1364
    %v1381 = vsub.f32 %v1355, %v1365
    %v1382 = vadd.f32 %v1378, 1e-05
    %v1383 = vadd.f32 %v1379, 1e-05
    %v1384 = vrsqrt.pop %v1382
    %v1385 = vrsqrt.pop %v1383
    %v1386 = vmul.f32 %v1380, %v1384
    %v1387 = vmul.f32 %v1381, %v1385
    %v1389 = vlaneseq
    %v1390 = vshrl.u32 %v1389, 7
    %v1391 = vsub.s32 0, %v1390
    %v1392 = vrot.slane %v1356, %v1391
    %v1394 = vmul.f32 %v1386, %v1392
    %v1395 = vmul.f32 %v1387, %v1392
    %v1397 = vlaneseq
    %v1398 = vshrl.u32 %v1397, 7
    %v1399 = vsub.s32 0, %v1398
    %v1400 = vrot.slane %v1357, %v1399
    %v1402 = vadd.f32 %v1394, %v1400
    %v1403 = vadd.f32 %v1395, %v1400
    %v1404 = vld [vmem:[%s14] sm:$0xff]
    %v1405 = vld [vmem:[%s14 + $0x8] sm:$0xff]
    %v1406 = vld [vmem:[%s14 + $0x10] sm:$0xff]
    %v1407 = vld [vmem:[%s14 + $0x18] sm:$0xff]
    %v1409 = vsel %vm83, %v1402, 0
    %v1412 = vsel %vm83, %v1403, 0
    %1414 = vmatprep.subr.mxu0 0.0
    %1415 = vmatpush1.msra.mxu0 %v1404
    %1416 = vmatprep.subr.mxu0 0.0
    %1417 = vmatpush1.msra.mxu0 %v1405
    %1418 = vmatprep.subr.mxu0 0.0
    %1419 = vmatpush1.msra.mxu0 %v1406
    %1420 = vmatprep.subr.mxu0 0.0
    %1421 = vmatpush1.msra.mxu0 %v1407
    %1422 = vmatprep.subr.mxu0 0.0
    %1423 = vmatpush1.msra.mxu0 0.0
    %1424 = vmatprep.subr.mxu0 0.0
    %1425 = vmatpush1.msra.mxu0 0.0
    %1426 = vmatprep.subr.mxu0 0.0
    %1427 = vmatpush1.msra.mxu0 0.0
    %1428 = vmatprep.subr.mxu0 0.0
    %1429 = vmatpush1.msra.mxu0 0.0
    %1430 = vmatprep.subr.mxu0 0.0
    %1431 = vmatpush1.msra.mxu0 0.0
    %1432 = vmatprep.subr.mxu0 0.0
    %1433 = vmatpush1.msra.mxu0 0.0
    %1434 = vmatprep.subr.mxu0 0.0
    %1435 = vmatpush1.msra.mxu0 0.0
    %1436 = vmatprep.subr.mxu0 0.0
    %1437 = vmatpush1.msra.mxu0 0.0
    %1438 = vmatprep.subr.mxu0 0.0
    %1439 = vmatpush1.msra.mxu0 0.0
    %1440 = vmatprep.subr.mxu0 0.0
    %1441 = vmatpush1.msra.mxu0 0.0
    %1442 = vmatprep.subr.mxu0 0.0
    %1443 = vmatpush1.msra.mxu0 0.0
    %1444 = vmatprep.subr.mxu0 0.0
    %1445 = vmatpush1.msra.mxu0 0.0
    %1446 = vmatprep.subr.mxu0 0.0
    %1447 = vmatpush1.msra.mxu0 0.0
    %1448 = vmatprep.subr.mxu0 0.0
    %1449 = vmatpush1.msra.mxu0 0.0
    %1450 = vmatprep.subr.mxu0 0.0
    %1451 = vmatpush1.msra.mxu0 0.0
    %1452 = vmatprep.subr.mxu0 0.0
    %1453 = vmatpush1.msra.mxu0 0.0
    %1454 = vmatprep.subr.mxu0 0.0
    %1455 = vmatpush1.msra.mxu0 0.0
    %1456 = vmatprep.subr.mxu0 0.0
    %1457 = vmatpush1.msra.mxu0 0.0
    %1458 = vmatprep.subr.mxu0 0.0
    %1459 = vmatpush1.msra.mxu0 0.0
    %1460 = vmatprep.subr.mxu0 0.0
    %1461 = vmatpush1.msra.mxu0 0.0
    %1462 = vmatprep.subr.mxu0 0.0
    %1463 = vmatpush1.msra.mxu0 0.0
    %1464 = vmatprep.subr.mxu0 0.0
    %1465 = vmatpush1.msra.mxu0 0.0
    %1466 = vmatprep.subr.mxu0 0.0
    %1467 = vmatpush1.msra.mxu0 0.0
    %1468 = vmatprep.subr.mxu0 0.0
    %1469 = vmatpush1.msra.mxu0 0.0
    %1470 = vmatprep.subr.mxu0 0.0
    %1471 = vmatpush1.msra.mxu0 0.0
    %1472 = vmatprep.subr.mxu0 0.0
    %1473 = vmatpush1.msra.mxu0 0.0
    %1474 = vmatprep.subr.mxu0 0.0
    %1475 = vmatpush1.msra.mxu0 0.0
    %1476 = vmatprep.subr.mxu0 0.0
    %1477 = vmatpush1.msra.mxu0 0.0
    %1478 = vmatprep.mubr.f32.mxu0 0.0
    %1479 = vmatmul.mubr.f32.gmra.mrb[0].mxu0 %v1409
    %v1480 = vpop.f32.mrb[0].mxu0
    %v1481 = vadd.f32 0.0, %v1480
    %v1482 = vpop.f32.mrb[0].mxu0
    %1483 = vmatprep.mubr.f32.mxu0 0.0
    %1484 = vmatmul.mubr.f32.gmra.mrb[0].mxu0 %v1412
    %v1485 = vpop.f32.mrb[0].mxu0
    %v1486 = vadd.f32 0.0, %v1485
    %v1487 = vpop.f32.mrb[0].mxu0
    %1488 = vdwg.mxu0
    %vm1489 = vcmask 31744
    %v1490 = vsel %vm1489, %v1481, 0.0
    %v1491 = vrot.slane %v1490, 4
    %v1492 = vadd.f32 %v1490, %v1491
    %v1493 = vrot.slane %v1492, 2
    %v1494 = vadd.f32 %v1492, %v1493
    %v1495 = vrot.slane %v1494, 1
    %v1496 = vadd.f32 %v1494, %v1495
    %v1497 = vrcp.pop 8.0
    %v1498 = vmul.f32 %v1496, %v1497
    %v1499 = vsel %vm1489, %v1486, 0.0
    %v1500 = vrot.slane %v1499, 4
    %v1501 = vadd.f32 %v1499, %v1500
    %v1502 = vrot.slane %v1501, 2
    %v1503 = vadd.f32 %v1501, %v1502
    %v1504 = vrot.slane %v1503, 1
    %v1505 = vadd.f32 %v1503, %v1504
    %v1506 = vmul.f32 %v1505, %v1497
    %vm1507 = vcmask 1040384
    %v1508 = vsel %vm1507, %v1498, %v1506
    %v1509 = vld [vmem:[%s15] sm:$0x1]
    %v1511 = vlaneseq
    %v1512 = vshrl.u32 %v1511, 7
    %v1513 = vsub.s32 0, %v1512
    %v1514 = vrot.slane %v1509, %v1513
    %v1516 = vadd.f32 %v1508, %v1514
    %vm1517 = vcmask 25600
    %1518 = vst.msk [vmem:[#allocation5] sm:$0x3] %vm1517, %v1516
    // Predicated region
    $region70: #{tpu_custom_call.1} parent=1 // pred_check
      _
    $region71: #{tpu_custom_call.1} parent=1 // pred_check_branch
      %1520 = sbr.rel (0) target = $region73
    $region72: #{tpu_custom_call.1} parent=1 // pred_region
      %s1522 = ssub.s32 32, 32
      %1523 = vsyncadd [#allocation4], %s1522
      %s1525 = sshll.u32 [#allocation5], 4
      %s1526 = int_to_ptr.vmem [resolvable:$true] %s1525
      %1528 = dma.vmem_to_hbm [thread:$0]  %s1526, 32, %s16, [#allocation4]
    $region73: #{tpu_custom_call.1} parent=1 // pred_fallthru
      _
    // Predicated region
    $region74: #{tpu_custom_call.1} parent=1 // pred_check
      _
    $region75: #{tpu_custom_call.1} parent=1 // pred_check_branch
      %1530 = sbr.rel (0) target = $region77
    $region76: #{tpu_custom_call.1} parent=1 // pred_region
      %1531 = dma.done [#allocation4], 32
    $region77: #{tpu_custom_call.1} parent=1 // pred_fallthru
      _
    %1532 = vsyncpa [#allocation3], 1
    %1533 = vsyncpa [#allocation4], 1

</llo_original>
